<compile_context>
chip_gen: v5e
topology: v5e:2x2
jax: 0.10.0
libtpu: 0.0.40
codegen_flags: <defaults>
</compile_context>

<pallas_src>
import jax
import jax.numpy as jnp
import numpy as np
from jax import lax
from jax.experimental import pallas as pl
from jax.experimental.pallas import tpu as pltpu

# ---------------------------------------------------------------------------
# Configuration (small shapes consistent with the module)
# ---------------------------------------------------------------------------
B = 2              # batch size
N = 16             # num_nodes
D = 4              # input_dim (per-node ODE state dim)
H = 8              # gcn_hidden_dim
K_CHEB = 3         # K_neighbour (Chebyshev filter order)
NUM_EDGES = N * 3  # M
ND = N * D         # 64
NH = N * H         # 128
DIFF_COEFF = 0.1   # module: self.diff_coeff = 0.1 (estimate=False)
# num_layers = 2 (default) -> ChebConv(D->H), tanh, ChebConv(H->D); the
# residual middle loop `for op in conv[1:-1]` is empty.

WIND_MEAN = (3.0, 180.0)
WIND_STD = (1.5, 90.0)


# ---------------------------------------------------------------------------
# Fused Pallas kernel (one grid step == one ODEFunc evaluation)
# ---------------------------------------------------------------------------
def odefunc_kernel(x_ref, ldD_ref, ldH_ref, laD_ref, laH_ref,
                   wd0_ref, bd0_ref, wd1_ref, bd1_ref,
                   wa0_ref, ba0_ref, wa1_ref, ba1_ref,
                   wg1_ref, wg2_ref, bg_ref, beta_ref, out_ref):
    f32 = jnp.float32
    x = x_ref[...]                                        # (B, ND) flat rows

    def dot(a, b):
        return jnp.dot(a, b, preferred_element_type=f32)

    def cheb_basis(h, apply_lap):
        """T_0 .. T_{K-1} of h (Chebyshev recurrence with lambda_max=2)."""
        txs = [h]
        if K_CHEB > 1:
            txs.append(apply_lap(h))
        for _ in range(2, K_CHEB):
            txs.append(2.0 * apply_lap(txs[-1]) - txs[-2])
        return txs

    def weight_sum(txs, w_ref, b_ref):
        """sum_k T_k @ kron(I_N, W_k) + bias — K accumulating dots, no concat
        along lanes (weight chunks are pre-split on a leading K axis)."""
        acc = b_ref[...]
        for k, t in enumerate(txs):
            acc = acc + dot(t, w_ref[k])
        return acc

    # ---- diffusion branch: Laplacian shared across the batch -> fully batched.
    hd = jnp.tanh(weight_sum(cheb_basis(x, lambda h: dot(h, ldD_ref[...])),
                             wd0_ref, bd0_ref))                       # (B, NH)
    gd = weight_sum(cheb_basis(hd, lambda h: dot(h, ldH_ref[...])),
                    wd1_ref, bd1_ref)                                 # (B, ND); -diff_coeff folded

    # ---- advection branch: only the Laplacian application is per-batch; the
    #      weight matmuls / activations / gate stay batched over B rows.
    def lap_adv(h, la_ref):
        rows = [dot(h[bi:bi + 1, :], la_ref[bi]) for bi in range(B)]  # B = 2, unrolled
        return jnp.concatenate(rows, axis=0)                          # sublane stack, (B, .)

    ha = jnp.tanh(weight_sum(cheb_basis(x, lambda h: lap_adv(h, laD_ref)),
                             wa0_ref, ba0_ref))                       # (B, NH)
    ga = weight_sum(cheb_basis(ha, lambda h: lap_adv(h, laH_ref)),
                    wa1_ref, ba1_ref)                                 # (B, ND); minus sign folded

    # ---- gated fusion + beta * Xt; ONE full-block store.
    # TODO(synk): Gated_Fusion is not defined in the provided source; assumed
    #   z = sigmoid(grad_diff @ Wg1 + grad_adv @ Wg2 + bg),
    #   out = z * grad_diff + (1 - z) * grad_adv.
    z = jax.nn.sigmoid(dot(gd, wg1_ref[...]) + dot(ga, wg2_ref[...]) + bg_ref[...])
    out_ref[...] = ga + z * (gd - ga) + beta_ref[...] * x


def _resident_spec(arr):
    """Whole-array block with a constant index_map: DMA'd once, stays in VMEM
    for every grid step (operator residency across evaluations)."""
    nd = arr.ndim
    return pl.BlockSpec(arr.shape, lambda s, _nd=nd: (0,) * _nd)


@jax.jit
def ode_func_forward_many(x_stack, ldD, ldH, laD, laH,
                          wd0s, bd0s, wd1s, bd1s,
                          wa0s, ba0s, wa1s, ba1s,
                          wg1, wg2, bg, beta):
    """Evaluate the ODE gradient for S stacked states in one pallas_call.

    x_stack: (S, B, N*D).  The Laplacians / weights get constant index_maps so
    they are shipped to VMEM once and reused across all S grid steps.
    """
    S = x_stack.shape[0]
    ops = (ldD, ldH, laD, laH, wd0s, bd0s, wd1s, bd1s,
           wa0s, ba0s, wa1s, ba1s, wg1, wg2, bg, beta)
    in_specs = ([pl.BlockSpec((None, B, ND), lambda s: (s, 0, 0))]
                + [_resident_spec(o) for o in ops])
    out_specs = pl.BlockSpec((None, B, ND), lambda s: (s, 0, 0))
    return pl.pallas_call(
        odefunc_kernel,
        out_shape=jax.ShapeDtypeStruct((S, B, ND), jnp.float32),
        grid=(S,),
        in_specs=in_specs,
        out_specs=out_specs,
        compiler_params=pltpu.CompilerParams(dimension_semantics=("arbitrary",)),
    )(x_stack, *ops)


@jax.jit
def ode_func_forward(x_flat, *ops):
    """Module-equivalent single forward (S=1 case of the fused kernel)."""
    return ode_func_forward_many(x_flat[None], *ops)[0]


# ---------------------------------------------------------------------------
# Setup-time operator construction (plain JAX glue; weights built once at
# setup, advection Laplacians once per create_equation(), as in the module).
# ---------------------------------------------------------------------------
def build_scaled_laplacian(edge_index, edge_weight, num_nodes):
    """ChebConv 'sym' normalization with lambda_max=2:
       L_hat = 2L/lambda_max - I = -(D^-1/2 A D^-1/2), zero diagonal."""
    src, dst = edge_index[0], edge_index[1]
    deg = jnp.zeros((num_nodes,), jnp.float32).at[src].add(edge_weight)
    dinv = jnp.where(deg > 0, lax.rsqrt(jnp.maximum(deg, 1e-30)), 0.0)
    w = dinv[src] * edge_weight * dinv[dst]
    l_hat = jnp.zeros((num_nodes, num_nodes), jnp.float32).at[dst, src].add(-w)
    return l_hat


def create_adv_matrix(last_wind_vars, edge_index, edge_attr):
    """Mirror of ODEFunc.create_adv_matrix (elementwise + gather glue)."""
    src = edge_index[0]
    node_src = last_wind_vars[:, src, :]                       # (B, M, 2)
    src_wind_speed = node_src[:, :, 0] * WIND_STD[0] + WIND_MEAN[0]
    src_wind_dir = node_src[:, :, 1] * WIND_STD[1] + WIND_MEAN[1]
    dist = edge_attr[:, 1][None, :]                            # (1, M)
    dist_dir = edge_attr[:, 2][None, :]
    src_wind_dir = (src_wind_dir + 180.0) % 360.0
    theta = jnp.abs(dist_dir - src_wind_dir)
    # NB: torch.cos treats theta (degree-valued) as radians; reproduced exactly.
    adv = jax.nn.relu(3.0 * src_wind_speed * jnp.cos(theta) / dist)
    return adv                                                 # (B, M)


def kron_lap(L, F):
    """Right-multiplying a flat (.., N*F) row by kron(L^T, I_F) applies
       Y = L @ X for X of shape (N, F) laid out node-major / feature-minor."""
    return jnp.kron(L.T, jnp.eye(F, dtype=L.dtype))


def split_cheb_weight(W, scale=1.0):
    """(K, Fin, Fout) -> (K, N*Fin, N*Fout): per-k kron(I_N, W_k), pre-scaled
    so the kernel never multiplies by -diff_coeff / -1."""
    eyeN = jnp.eye(N, dtype=W.dtype)
    return jnp.stack([scale * jnp.kron(eyeN, W[k]) for k in range(K_CHEB)], axis=0)


def tile_bias(b, scale=1.0):
    """(1, Fout) -> (1, N*Fout) matching flat index n*Fout + f (pre-scaled)."""
    return scale * jnp.tile(b, (1, N))


# ---------------------------------------------------------------------------
# Pure-JAX reference (for correctness check)
# ---------------------------------------------------------------------------
def _cheb_ref(L, h, w, b):
    hi = lax.Precision.HIGHEST
    tx0 = h
    out = jnp.dot(tx0, w[0], precision=hi)
    tx1 = jnp.dot(L, h, precision=hi)
    out = out + jnp.dot(tx1, w[1], precision=hi)
    for k in range(2, K_CHEB):
        tx2 = 2.0 * jnp.dot(L, tx1, precision=hi) - tx0
        out = out + jnp.dot(tx2, w[k], precision=hi)
        tx0, tx1 = tx1, tx2
    return out + b


def reference_forward(x_flat, l_diff, l_adv,
                      wd0, bd0, wd1, bd1, wa0, ba0, wa1, ba1,
                      wg1, wg2, bg, beta):
    hi = lax.Precision.HIGHEST
    x = x_flat.reshape(B, N, D)

    def per_batch(xb, lab):
        hd = jnp.tanh(_cheb_ref(l_diff, xb, wd0, bd0))
        gd = (-DIFF_COEFF) * _cheb_ref(l_diff, hd, wd1, bd1)
        ha = jnp.tanh(_cheb_ref(lab, xb, wa0, ba0))
        ga = -_cheb_ref(lab, ha, wa1, ba1)
        return gd, ga

    gd, ga = jax.vmap(per_batch)(x, l_adv)
    gd = gd.reshape(B, ND)
    ga = ga.reshape(B, ND)
    z = jax.nn.sigmoid(jnp.dot(gd, wg1, precision=hi)
                       + jnp.dot(ga, wg2, precision=hi) + bg)
    fused = z * gd + (1.0 - z) * ga
    return fused + beta * x_flat


# ---------------------------------------------------------------------------
# Main
# ---------------------------------------------------------------------------
if __name__ == "__main__":
    key = jax.random.PRNGKey(0)
    (k_x, k_wind, k_e1, k_e2, k_e3,
     k_wd0, k_bd0, k_wd1, k_bd1,
     k_wa0, k_ba0, k_wa1, k_ba1,
     k_wg1, k_wg2, k_bg, k_multi) = jax.random.split(key, 17)

    # Graph: each node i has out-edges to (i+1)%N, (i+2)%N, (i+3)%N
    src = np.repeat(np.arange(N), 3)
    dst = (src + np.tile(np.array([1, 2, 3]), N)) % N
    edge_index = jnp.asarray(np.stack([src, dst]), dtype=jnp.int32)    # (2, M)

    # edge_attr columns: {diff_dist, dist_km, direction}
    edge_attr = jnp.stack([
        jax.random.uniform(k_e1, (NUM_EDGES,), minval=0.5, maxval=1.5),
        jax.random.uniform(k_e2, (NUM_EDGES,), minval=1.0, maxval=10.0),
        jax.random.uniform(k_e3, (NUM_EDGES,), minval=0.0, maxval=360.0),
    ], axis=1).astype(jnp.float32)                                     # (M, 3)

    # Inputs
    Xt = jax.random.normal(k_x, (B, ND), jnp.float32)                  # ODE state
    last_wind_vars = jax.random.normal(k_wind, (B, N, 2), jnp.float32)

    # Deterministic parameter init (ChebConv lins + bias, gated fusion, beta)
    def init(k, shape, scale=0.1):
        return scale * jax.random.normal(k, shape, jnp.float32)

    wd0, bd0 = init(k_wd0, (K_CHEB, D, H)), init(k_bd0, (1, H))
    wd1, bd1 = init(k_wd1, (K_CHEB, H, D)), init(k_bd1, (1, D))
    wa0, ba0 = init(k_wa0, (K_CHEB, D, H)), init(k_ba0, (1, H))
    wa1, ba1 = init(k_wa1, (K_CHEB, H, D)), init(k_ba1, (1, D))
    wg1, wg2 = init(k_wg1, (ND, ND)), init(k_wg2, (ND, ND))
    bg = init(k_bg, (1, ND))
    beta = jnp.zeros((1, ND), jnp.float32)   # nn.Parameter(torch.zeros(N*D))

    # create_equation(): advection edge weights + dense scaled Laplacians
    diff_edge_attr = edge_attr[:, 0]
    adv_edge_attr = create_adv_matrix(last_wind_vars, edge_index, edge_attr)
    L_diff = build_scaled_laplacian(edge_index, diff_edge_attr, N)
    L_adv = jax.vmap(
        lambda w: build_scaled_laplacian(edge_index, w, N))(adv_edge_attr)

    # Kernel-layout operators (weights once at setup; L_adv per create_equation)
    ldD = kron_lap(L_diff, D)                        # (ND, ND)
    ldH = kron_lap(L_diff, H)                        # (NH, NH)
    laD = jax.vmap(lambda L: kron_lap(L, D))(L_adv)  # (B, ND, ND)
    laH = jax.vmap(lambda L: kron_lap(L, H))(L_adv)  # (B, NH, NH)

    wd0s, bd0s = split_cheb_weight(wd0), tile_bias(bd0)
    wd1s, bd1s = split_cheb_weight(wd1, -DIFF_COEFF), tile_bias(bd1, -DIFF_COEFF)
    wa0s, ba0s = split_cheb_weight(wa0), tile_bias(ba0)
    wa1s, ba1s = split_cheb_weight(wa1, -1.0), tile_bias(ba1, -1.0)

    ops = (ldD, ldH, laD, laH, wd0s, bd0s, wd1s, bd1s,
           wa0s, ba0s, wa1s, ba1s, wg1, wg2, bg, beta)

    # ---- single forward (module-equivalent) -------------------------------
    grad = ode_func_forward(Xt, *ops)
    jax.block_until_ready(grad)

    ref = reference_forward(Xt, L_diff, L_adv,
                            wd0, bd0, wd1, bd1, wa0, ba0, wa1, ba1,
                            wg1, wg2, bg, beta)
    np.testing.assert_allclose(np.asarray(grad), np.asarray(ref),
                               rtol=5e-4, atol=5e-4)
    assert grad.shape == (B, ND) and grad.dtype == jnp.float32

    # ---- multi-evaluation call: operators stay VMEM-resident across steps --
    S = 4
    Xt_stack = jax.random.normal(k_multi, (S, B, ND), jnp.float32)
    grads = ode_func_forward_many(Xt_stack, *ops)
    jax.block_until_ready(grads)
    refs = jax.vmap(lambda xs: reference_forward(
        xs, L_diff, L_adv, wd0, bd0, wd1, bd1, wa0, ba0, wa1, ba1,
        wg1, wg2, bg, beta))(Xt_stack)
    np.testing.assert_allclose(np.asarray(grads), np.asarray(refs),
                               rtol=5e-4, atol=5e-4)

    print("KERNEL_OK")
</pallas_src>

<mosaic_0001>
module attributes {stable_mosaic.version = 11 : i64} {
  func.func @odefunc_kernel(%arg0: i32, %arg1: memref<1x2x64xf32, #tpu.memory_space<vmem>>, %arg2: memref<64x64xf32, #tpu.memory_space<vmem>>, %arg3: memref<128x128xf32, #tpu.memory_space<vmem>>, %arg4: memref<2x64x64xf32, #tpu.memory_space<vmem>>, %arg5: memref<2x128x128xf32, #tpu.memory_space<vmem>>, %arg6: memref<3x64x128xf32, #tpu.memory_space<vmem>>, %arg7: memref<1x128xf32, #tpu.memory_space<vmem>>, %arg8: memref<3x128x64xf32, #tpu.memory_space<vmem>>, %arg9: memref<1x64xf32, #tpu.memory_space<vmem>>, %arg10: memref<3x64x128xf32, #tpu.memory_space<vmem>>, %arg11: memref<1x128xf32, #tpu.memory_space<vmem>>, %arg12: memref<3x128x64xf32, #tpu.memory_space<vmem>>, %arg13: memref<1x64xf32, #tpu.memory_space<vmem>>, %arg14: memref<64x64xf32, #tpu.memory_space<vmem>>, %arg15: memref<64x64xf32, #tpu.memory_space<vmem>>, %arg16: memref<1x64xf32, #tpu.memory_space<vmem>>, %arg17: memref<1x64xf32, #tpu.memory_space<vmem>>, %arg18: memref<1x2x64xf32, #tpu.memory_space<vmem>>) attributes {dimension_semantics = [#tpu.dimension_semantics<arbitrary>], iteration_bounds = array<i64: 1>, scalar_prefetch = 0 : i64, scratch_operands = 0 : i64, tpu.core_type = #tpu.core_type<tc>, window_params = [{transform_indices = @transform_0, window_bounds = array<i64: 1, 2, 64>}, {pipeline_mode = #tpu.pipeline_mode<synchronous>, transform_indices = @transform_1, window_bounds = array<i64: 64, 64>}, {pipeline_mode = #tpu.pipeline_mode<synchronous>, transform_indices = @transform_2, window_bounds = array<i64: 128, 128>}, {pipeline_mode = #tpu.pipeline_mode<synchronous>, transform_indices = @transform_3, window_bounds = array<i64: 2, 64, 64>}, {pipeline_mode = #tpu.pipeline_mode<synchronous>, transform_indices = @transform_4, window_bounds = array<i64: 2, 128, 128>}, {pipeline_mode = #tpu.pipeline_mode<synchronous>, transform_indices = @transform_5, window_bounds = array<i64: 3, 64, 128>}, {pipeline_mode = #tpu.pipeline_mode<synchronous>, transform_indices = @transform_6, window_bounds = array<i64: 1, 128>}, {pipeline_mode = #tpu.pipeline_mode<synchronous>, transform_indices = @transform_7, window_bounds = array<i64: 3, 128, 64>}, {pipeline_mode = #tpu.pipeline_mode<synchronous>, transform_indices = @transform_8, window_bounds = array<i64: 1, 64>}, {pipeline_mode = #tpu.pipeline_mode<synchronous>, transform_indices = @transform_9, window_bounds = array<i64: 3, 64, 128>}, {pipeline_mode = #tpu.pipeline_mode<synchronous>, transform_indices = @transform_10, window_bounds = array<i64: 1, 128>}, {pipeline_mode = #tpu.pipeline_mode<synchronous>, transform_indices = @transform_11, window_bounds = array<i64: 3, 128, 64>}, {pipeline_mode = #tpu.pipeline_mode<synchronous>, transform_indices = @transform_12, window_bounds = array<i64: 1, 64>}, {pipeline_mode = #tpu.pipeline_mode<synchronous>, transform_indices = @transform_13, window_bounds = array<i64: 64, 64>}, {pipeline_mode = #tpu.pipeline_mode<synchronous>, transform_indices = @transform_14, window_bounds = array<i64: 64, 64>}, {pipeline_mode = #tpu.pipeline_mode<synchronous>, transform_indices = @transform_15, window_bounds = array<i64: 1, 64>}, {pipeline_mode = #tpu.pipeline_mode<synchronous>, transform_indices = @transform_16, window_bounds = array<i64: 1, 64>}, {transform_indices = @transform_17, window_bounds = array<i64: 1, 2, 64>}]} {
    %c0 = arith.constant 0 : index
    %c0_0 = arith.constant 0 : index
    %c0_1 = arith.constant 0 : index
    %0 = vector.load %arg1[%c0, %c0_0, %c0_1] : memref<1x2x64xf32, #tpu.memory_space<vmem>>, vector<1x2x64xf32>
    %1 = vector.shape_cast %0 : vector<1x2x64xf32> to vector<2x64xf32>
    %c0_2 = arith.constant 0 : index
    %c0_3 = arith.constant 0 : index
    %2 = vector.load %arg2[%c0_2, %c0_3] : memref<64x64xf32, #tpu.memory_space<vmem>>, vector<64x64xf32>
    %cst = arith.constant dense<0.000000e+00> : vector<2x64xf32>
    %3 = tpu.matmul %1, %2, %cst {dimension_numbers = #tpu.dot_dimension_numbers<[1], [0], [0], [1], [0, 0, 1, 1], [], []>} : vector<2x64xf32>, vector<64x64xf32>, vector<2x64xf32> -> vector<2x64xf32>
    %c0_4 = arith.constant 0 : index
    %c0_5 = arith.constant 0 : index
    %4 = vector.load %arg2[%c0_4, %c0_5] : memref<64x64xf32, #tpu.memory_space<vmem>>, vector<64x64xf32>
    %cst_6 = arith.constant dense<0.000000e+00> : vector<2x64xf32>
    %5 = tpu.matmul %3, %4, %cst_6 {dimension_numbers = #tpu.dot_dimension_numbers<[1], [0], [0], [1], [0, 0, 1, 1], [], []>} : vector<2x64xf32>, vector<64x64xf32>, vector<2x64xf32> -> vector<2x64xf32>
    %cst_7 = arith.constant 2.000000e+00 : f32
    %6 = vector.broadcast %cst_7 : f32 to vector<2x64xf32>
    %7 = arith.mulf %6, %5 : vector<2x64xf32>
    %8 = arith.subf %7, %1 : vector<2x64xf32>
    %c0_8 = arith.constant 0 : index
    %c0_9 = arith.constant 0 : index
    %9 = vector.load %arg7[%c0_8, %c0_9] : memref<1x128xf32, #tpu.memory_space<vmem>>, vector<1x128xf32>
    %c0_10 = arith.constant 0 : index
    %c0_11 = arith.constant 0 : index
    %c0_12 = arith.constant 0 : index
    %10 = vector.load %arg6[%c0_10, %c0_11, %c0_12] : memref<3x64x128xf32, #tpu.memory_space<vmem>>, vector<1x64x128xf32>
    %11 = vector.shape_cast %10 : vector<1x64x128xf32> to vector<64x128xf32>
    %cst_13 = arith.constant dense<0.000000e+00> : vector<2x128xf32>
    %12 = tpu.matmul %1, %11, %cst_13 {dimension_numbers = #tpu.dot_dimension_numbers<[1], [0], [0], [1], [0, 0, 1, 1], [], []>} : vector<2x64xf32>, vector<64x128xf32>, vector<2x128xf32> -> vector<2x128xf32>
    %13 = vector.broadcast %9 : vector<1x128xf32> to vector<2x128xf32>
    %14 = arith.addf %13, %12 : vector<2x128xf32>
    %c1 = arith.constant 1 : index
    %c0_14 = arith.constant 0 : index
    %c0_15 = arith.constant 0 : index
    %15 = vector.load %arg6[%c1, %c0_14, %c0_15] : memref<3x64x128xf32, #tpu.memory_space<vmem>>, vector<1x64x128xf32>
    %16 = vector.shape_cast %15 : vector<1x64x128xf32> to vector<64x128xf32>
    %cst_16 = arith.constant dense<0.000000e+00> : vector<2x128xf32>
    %17 = tpu.matmul %3, %16, %cst_16 {dimension_numbers = #tpu.dot_dimension_numbers<[1], [0], [0], [1], [0, 0, 1, 1], [], []>} : vector<2x64xf32>, vector<64x128xf32>, vector<2x128xf32> -> vector<2x128xf32>
    %18 = arith.addf %14, %17 : vector<2x128xf32>
    %c2 = arith.constant 2 : index
    %c0_17 = arith.constant 0 : index
    %c0_18 = arith.constant 0 : index
    %19 = vector.load %arg6[%c2, %c0_17, %c0_18] : memref<3x64x128xf32, #tpu.memory_space<vmem>>, vector<1x64x128xf32>
    %20 = vector.shape_cast %19 : vector<1x64x128xf32> to vector<64x128xf32>
    %cst_19 = arith.constant dense<0.000000e+00> : vector<2x128xf32>
    %21 = tpu.matmul %8, %20, %cst_19 {dimension_numbers = #tpu.dot_dimension_numbers<[1], [0], [0], [1], [0, 0, 1, 1], [], []>} : vector<2x64xf32>, vector<64x128xf32>, vector<2x128xf32> -> vector<2x128xf32>
    %22 = arith.addf %18, %21 : vector<2x128xf32>
    %23 = math.tanh %22 : vector<2x128xf32>
    %c0_20 = arith.constant 0 : index
    %c0_21 = arith.constant 0 : index
    %24 = vector.load %arg3[%c0_20, %c0_21] : memref<128x128xf32, #tpu.memory_space<vmem>>, vector<128x128xf32>
    %cst_22 = arith.constant dense<0.000000e+00> : vector<2x128xf32>
    %25 = tpu.matmul %23, %24, %cst_22 {dimension_numbers = #tpu.dot_dimension_numbers<[1], [0], [0], [1], [0, 0, 1, 1], [], []>} : vector<2x128xf32>, vector<128x128xf32>, vector<2x128xf32> -> vector<2x128xf32>
    %c0_23 = arith.constant 0 : index
    %c0_24 = arith.constant 0 : index
    %26 = vector.load %arg3[%c0_23, %c0_24] : memref<128x128xf32, #tpu.memory_space<vmem>>, vector<128x128xf32>
    %cst_25 = arith.constant dense<0.000000e+00> : vector<2x128xf32>
    %27 = tpu.matmul %25, %26, %cst_25 {dimension_numbers = #tpu.dot_dimension_numbers<[1], [0], [0], [1], [0, 0, 1, 1], [], []>} : vector<2x128xf32>, vector<128x128xf32>, vector<2x128xf32> -> vector<2x128xf32>
    %cst_26 = arith.constant 2.000000e+00 : f32
    %28 = vector.broadcast %cst_26 : f32 to vector<2x128xf32>
    %29 = arith.mulf %28, %27 : vector<2x128xf32>
    %30 = arith.subf %29, %23 : vector<2x128xf32>
    %c0_27 = arith.constant 0 : index
    %c0_28 = arith.constant 0 : index
    %31 = vector.load %arg9[%c0_27, %c0_28] : memref<1x64xf32, #tpu.memory_space<vmem>>, vector<1x64xf32>
    %c0_29 = arith.constant 0 : index
    %c0_30 = arith.constant 0 : index
    %c0_31 = arith.constant 0 : index
    %32 = vector.load %arg8[%c0_29, %c0_30, %c0_31] : memref<3x128x64xf32, #tpu.memory_space<vmem>>, vector<1x128x64xf32>
    %33 = vector.shape_cast %32 : vector<1x128x64xf32> to vector<128x64xf32>
    %cst_32 = arith.constant dense<0.000000e+00> : vector<2x64xf32>
    %34 = tpu.matmul %23, %33, %cst_32 {dimension_numbers = #tpu.dot_dimension_numbers<[1], [0], [0], [1], [0, 0, 1, 1], [], []>} : vector<2x128xf32>, vector<128x64xf32>, vector<2x64xf32> -> vector<2x64xf32>
    %35 = vector.broadcast %31 : vector<1x64xf32> to vector<2x64xf32>
    %36 = arith.addf %35, %34 : vector<2x64xf32>
    %c1_33 = arith.constant 1 : index
    %c0_34 = arith.constant 0 : index
    %c0_35 = arith.constant 0 : index
    %37 = vector.load %arg8[%c1_33, %c0_34, %c0_35] : memref<3x128x64xf32, #tpu.memory_space<vmem>>, vector<1x128x64xf32>
    %38 = vector.shape_cast %37 : vector<1x128x64xf32> to vector<128x64xf32>
    %cst_36 = arith.constant dense<0.000000e+00> : vector<2x64xf32>
    %39 = tpu.matmul %25, %38, %cst_36 {dimension_numbers = #tpu.dot_dimension_numbers<[1], [0], [0], [1], [0, 0, 1, 1], [], []>} : vector<2x128xf32>, vector<128x64xf32>, vector<2x64xf32> -> vector<2x64xf32>
    %40 = arith.addf %36, %39 : vector<2x64xf32>
    %c2_37 = arith.constant 2 : index
    %c0_38 = arith.constant 0 : index
    %c0_39 = arith.constant 0 : index
    %41 = vector.load %arg8[%c2_37, %c0_38, %c0_39] : memref<3x128x64xf32, #tpu.memory_space<vmem>>, vector<1x128x64xf32>
    %42 = vector.shape_cast %41 : vector<1x128x64xf32> to vector<128x64xf32>
    %cst_40 = arith.constant dense<0.000000e+00> : vector<2x64xf32>
    %43 = tpu.matmul %30, %42, %cst_40 {dimension_numbers = #tpu.dot_dimension_numbers<[1], [0], [0], [1], [0, 0, 1, 1], [], []>} : vector<2x128xf32>, vector<128x64xf32>, vector<2x64xf32> -> vector<2x64xf32>
    %44 = arith.addf %40, %43 : vector<2x64xf32>
    %45 = vector.extract_strided_slice %1 {offsets = [0, 0], sizes = [1, 64], strides = [1, 1]} : vector<2x64xf32> to vector<1x64xf32>
    %c0_41 = arith.constant 0 : index
    %c0_42 = arith.constant 0 : index
    %c0_43 = arith.constant 0 : index
    %46 = vector.load %arg4[%c0_41, %c0_42, %c0_43] : memref<2x64x64xf32, #tpu.memory_space<vmem>>, vector<1x64x64xf32>
    %47 = vector.shape_cast %46 : vector<1x64x64xf32> to vector<64x64xf32>
    %cst_44 = arith.constant dense<0.000000e+00> : vector<1x64xf32>
    %48 = tpu.matmul %45, %47, %cst_44 {dimension_numbers = #tpu.dot_dimension_numbers<[1], [0], [0], [1], [0, 0, 1, 1], [], []>} : vector<1x64xf32>, vector<64x64xf32>, vector<1x64xf32> -> vector<1x64xf32>
    %49 = vector.extract_strided_slice %1 {offsets = [1, 0], sizes = [1, 64], strides = [1, 1]} : vector<2x64xf32> to vector<1x64xf32>
    %c1_45 = arith.constant 1 : index
    %c0_46 = arith.constant 0 : index
    %c0_47 = arith.constant 0 : index
    %50 = vector.load %arg4[%c1_45, %c0_46, %c0_47] : memref<2x64x64xf32, #tpu.memory_space<vmem>>, vector<1x64x64xf32>
    %51 = vector.shape_cast %50 : vector<1x64x64xf32> to vector<64x64xf32>
    %cst_48 = arith.constant dense<0.000000e+00> : vector<1x64xf32>
    %52 = tpu.matmul %49, %51, %cst_48 {dimension_numbers = #tpu.dot_dimension_numbers<[1], [0], [0], [1], [0, 0, 1, 1], [], []>} : vector<1x64xf32>, vector<64x64xf32>, vector<1x64xf32> -> vector<1x64xf32>
    %53 = tpu.concatenate %48, %52 in 0 : vector<1x64xf32>, vector<1x64xf32> -> vector<2x64xf32>
    %54 = vector.extract_strided_slice %53 {offsets = [0, 0], sizes = [1, 64], strides = [1, 1]} : vector<2x64xf32> to vector<1x64xf32>
    %c0_49 = arith.constant 0 : index
    %c0_50 = arith.constant 0 : index
    %c0_51 = arith.constant 0 : index
    %55 = vector.load %arg4[%c0_49, %c0_50, %c0_51] : memref<2x64x64xf32, #tpu.memory_space<vmem>>, vector<1x64x64xf32>
    %56 = vector.shape_cast %55 : vector<1x64x64xf32> to vector<64x64xf32>
    %cst_52 = arith.constant dense<0.000000e+00> : vector<1x64xf32>
    %57 = tpu.matmul %54, %56, %cst_52 {dimension_numbers = #tpu.dot_dimension_numbers<[1], [0], [0], [1], [0, 0, 1, 1], [], []>} : vector<1x64xf32>, vector<64x64xf32>, vector<1x64xf32> -> vector<1x64xf32>
    %58 = vector.extract_strided_slice %53 {offsets = [1, 0], sizes = [1, 64], strides = [1, 1]} : vector<2x64xf32> to vector<1x64xf32>
    %c1_53 = arith.constant 1 : index
    %c0_54 = arith.constant 0 : index
    %c0_55 = arith.constant 0 : index
    %59 = vector.load %arg4[%c1_53, %c0_54, %c0_55] : memref<2x64x64xf32, #tpu.memory_space<vmem>>, vector<1x64x64xf32>
    %60 = vector.shape_cast %59 : vector<1x64x64xf32> to vector<64x64xf32>
    %cst_56 = arith.constant dense<0.000000e+00> : vector<1x64xf32>
    %61 = tpu.matmul %58, %60, %cst_56 {dimension_numbers = #tpu.dot_dimension_numbers<[1], [0], [0], [1], [0, 0, 1, 1], [], []>} : vector<1x64xf32>, vector<64x64xf32>, vector<1x64xf32> -> vector<1x64xf32>
    %62 = tpu.concatenate %57, %61 in 0 : vector<1x64xf32>, vector<1x64xf32> -> vector<2x64xf32>
    %cst_57 = arith.constant 2.000000e+00 : f32
    %63 = vector.broadcast %cst_57 : f32 to vector<2x64xf32>
    %64 = arith.mulf %63, %62 : vector<2x64xf32>
    %65 = arith.subf %64, %1 : vector<2x64xf32>
    %c0_58 = arith.constant 0 : index
    %c0_59 = arith.constant 0 : index
    %66 = vector.load %arg11[%c0_58, %c0_59] : memref<1x128xf32, #tpu.memory_space<vmem>>, vector<1x128xf32>
    %c0_60 = arith.constant 0 : index
    %c0_61 = arith.constant 0 : index
    %c0_62 = arith.constant 0 : index
    %67 = vector.load %arg10[%c0_60, %c0_61, %c0_62] : memref<3x64x128xf32, #tpu.memory_space<vmem>>, vector<1x64x128xf32>
    %68 = vector.shape_cast %67 : vector<1x64x128xf32> to vector<64x128xf32>
    %cst_63 = arith.constant dense<0.000000e+00> : vector<2x128xf32>
    %69 = tpu.matmul %1, %68, %cst_63 {dimension_numbers = #tpu.dot_dimension_numbers<[1], [0], [0], [1], [0, 0, 1, 1], [], []>} : vector<2x64xf32>, vector<64x128xf32>, vector<2x128xf32> -> vector<2x128xf32>
    %70 = vector.broadcast %66 : vector<1x128xf32> to vector<2x128xf32>
    %71 = arith.addf %70, %69 : vector<2x128xf32>
    %c1_64 = arith.constant 1 : index
    %c0_65 = arith.constant 0 : index
    %c0_66 = arith.constant 0 : index
    %72 = vector.load %arg10[%c1_64, %c0_65, %c0_66] : memref<3x64x128xf32, #tpu.memory_space<vmem>>, vector<1x64x128xf32>
    %73 = vector.shape_cast %72 : vector<1x64x128xf32> to vector<64x128xf32>
    %cst_67 = arith.constant dense<0.000000e+00> : vector<2x128xf32>
    %74 = tpu.matmul %53, %73, %cst_67 {dimension_numbers = #tpu.dot_dimension_numbers<[1], [0], [0], [1], [0, 0, 1, 1], [], []>} : vector<2x64xf32>, vector<64x128xf32>, vector<2x128xf32> -> vector<2x128xf32>
    %75 = arith.addf %71, %74 : vector<2x128xf32>
    %c2_68 = arith.constant 2 : index
    %c0_69 = arith.constant 0 : index
    %c0_70 = arith.constant 0 : index
    %76 = vector.load %arg10[%c2_68, %c0_69, %c0_70] : memref<3x64x128xf32, #tpu.memory_space<vmem>>, vector<1x64x128xf32>
    %77 = vector.shape_cast %76 : vector<1x64x128xf32> to vector<64x128xf32>
    %cst_71 = arith.constant dense<0.000000e+00> : vector<2x128xf32>
    %78 = tpu.matmul %65, %77, %cst_71 {dimension_numbers = #tpu.dot_dimension_numbers<[1], [0], [0], [1], [0, 0, 1, 1], [], []>} : vector<2x64xf32>, vector<64x128xf32>, vector<2x128xf32> -> vector<2x128xf32>
    %79 = arith.addf %75, %78 : vector<2x128xf32>
    %80 = math.tanh %79 : vector<2x128xf32>
    %81 = vector.extract_strided_slice %80 {offsets = [0, 0], sizes = [1, 128], strides = [1, 1]} : vector<2x128xf32> to vector<1x128xf32>
    %c0_72 = arith.constant 0 : index
    %c0_73 = arith.constant 0 : index
    %c0_74 = arith.constant 0 : index
    %82 = vector.load %arg5[%c0_72, %c0_73, %c0_74] : memref<2x128x128xf32, #tpu.memory_space<vmem>>, vector<1x128x128xf32>
    %83 = vector.shape_cast %82 : vector<1x128x128xf32> to vector<128x128xf32>
    %cst_75 = arith.constant dense<0.000000e+00> : vector<1x128xf32>
    %84 = tpu.matmul %81, %83, %cst_75 {dimension_numbers = #tpu.dot_dimension_numbers<[1], [0], [0], [1], [0, 0, 1, 1], [], []>} : vector<1x128xf32>, vector<128x128xf32>, vector<1x128xf32> -> vector<1x128xf32>
    %85 = vector.extract_strided_slice %80 {offsets = [1, 0], sizes = [1, 128], strides = [1, 1]} : vector<2x128xf32> to vector<1x128xf32>
    %c1_76 = arith.constant 1 : index
    %c0_77 = arith.constant 0 : index
    %c0_78 = arith.constant 0 : index
    %86 = vector.load %arg5[%c1_76, %c0_77, %c0_78] : memref<2x128x128xf32, #tpu.memory_space<vmem>>, vector<1x128x128xf32>
    %87 = vector.shape_cast %86 : vector<1x128x128xf32> to vector<128x128xf32>
    %cst_79 = arith.constant dense<0.000000e+00> : vector<1x128xf32>
    %88 = tpu.matmul %85, %87, %cst_79 {dimension_numbers = #tpu.dot_dimension_numbers<[1], [0], [0], [1], [0, 0, 1, 1], [], []>} : vector<1x128xf32>, vector<128x128xf32>, vector<1x128xf32> -> vector<1x128xf32>
    %89 = tpu.concatenate %84, %88 in 0 : vector<1x128xf32>, vector<1x128xf32> -> vector<2x128xf32>
    %90 = vector.extract_strided_slice %89 {offsets = [0, 0], sizes = [1, 128], strides = [1, 1]} : vector<2x128xf32> to vector<1x128xf32>
    %c0_80 = arith.constant 0 : index
    %c0_81 = arith.constant 0 : index
    %c0_82 = arith.constant 0 : index
    %91 = vector.load %arg5[%c0_80, %c0_81, %c0_82] : memref<2x128x128xf32, #tpu.memory_space<vmem>>, vector<1x128x128xf32>
    %92 = vector.shape_cast %91 : vector<1x128x128xf32> to vector<128x128xf32>
    %cst_83 = arith.constant dense<0.000000e+00> : vector<1x128xf32>
    %93 = tpu.matmul %90, %92, %cst_83 {dimension_numbers = #tpu.dot_dimension_numbers<[1], [0], [0], [1], [0, 0, 1, 1], [], []>} : vector<1x128xf32>, vector<128x128xf32>, vector<1x128xf32> -> vector<1x128xf32>
    %94 = vector.extract_strided_slice %89 {offsets = [1, 0], sizes = [1, 128], strides = [1, 1]} : vector<2x128xf32> to vector<1x128xf32>
    %c1_84 = arith.constant 1 : index
    %c0_85 = arith.constant 0 : index
    %c0_86 = arith.constant 0 : index
    %95 = vector.load %arg5[%c1_84, %c0_85, %c0_86] : memref<2x128x128xf32, #tpu.memory_space<vmem>>, vector<1x128x128xf32>
    %96 = vector.shape_cast %95 : vector<1x128x128xf32> to vector<128x128xf32>
    %cst_87 = arith.constant dense<0.000000e+00> : vector<1x128xf32>
    %97 = tpu.matmul %94, %96, %cst_87 {dimension_numbers = #tpu.dot_dimension_numbers<[1], [0], [0], [1], [0, 0, 1, 1], [], []>} : vector<1x128xf32>, vector<128x128xf32>, vector<1x128xf32> -> vector<1x128xf32>
    %98 = tpu.concatenate %93, %97 in 0 : vector<1x128xf32>, vector<1x128xf32> -> vector<2x128xf32>
    %cst_88 = arith.constant 2.000000e+00 : f32
    %99 = vector.broadcast %cst_88 : f32 to vector<2x128xf32>
    %100 = arith.mulf %99, %98 : vector<2x128xf32>
    %101 = arith.subf %100, %80 : vector<2x128xf32>
    %c0_89 = arith.constant 0 : index
    %c0_90 = arith.constant 0 : index
    %102 = vector.load %arg13[%c0_89, %c0_90] : memref<1x64xf32, #tpu.memory_space<vmem>>, vector<1x64xf32>
    %c0_91 = arith.constant 0 : index
    %c0_92 = arith.constant 0 : index
    %c0_93 = arith.constant 0 : index
    %103 = vector.load %arg12[%c0_91, %c0_92, %c0_93] : memref<3x128x64xf32, #tpu.memory_space<vmem>>, vector<1x128x64xf32>
    %104 = vector.shape_cast %103 : vector<1x128x64xf32> to vector<128x64xf32>
    %cst_94 = arith.constant dense<0.000000e+00> : vector<2x64xf32>
    %105 = tpu.matmul %80, %104, %cst_94 {dimension_numbers = #tpu.dot_dimension_numbers<[1], [0], [0], [1], [0, 0, 1, 1], [], []>} : vector<2x128xf32>, vector<128x64xf32>, vector<2x64xf32> -> vector<2x64xf32>
    %106 = vector.broadcast %102 : vector<1x64xf32> to vector<2x64xf32>
    %107 = arith.addf %106, %105 : vector<2x64xf32>
    %c1_95 = arith.constant 1 : index
    %c0_96 = arith.constant 0 : index
    %c0_97 = arith.constant 0 : index
    %108 = vector.load %arg12[%c1_95, %c0_96, %c0_97] : memref<3x128x64xf32, #tpu.memory_space<vmem>>, vector<1x128x64xf32>
    %109 = vector.shape_cast %108 : vector<1x128x64xf32> to vector<128x64xf32>
    %cst_98 = arith.constant dense<0.000000e+00> : vector<2x64xf32>
    %110 = tpu.matmul %89, %109, %cst_98 {dimension_numbers = #tpu.dot_dimension_numbers<[1], [0], [0], [1], [0, 0, 1, 1], [], []>} : vector<2x128xf32>, vector<128x64xf32>, vector<2x64xf32> -> vector<2x64xf32>
    %111 = arith.addf %107, %110 : vector<2x64xf32>
    %c2_99 = arith.constant 2 : index
    %c0_100 = arith.constant 0 : index
    %c0_101 = arith.constant 0 : index
    %112 = vector.load %arg12[%c2_99, %c0_100, %c0_101] : memref<3x128x64xf32, #tpu.memory_space<vmem>>, vector<1x128x64xf32>
    %113 = vector.shape_cast %112 : vector<1x128x64xf32> to vector<128x64xf32>
    %cst_102 = arith.constant dense<0.000000e+00> : vector<2x64xf32>
    %114 = tpu.matmul %101, %113, %cst_102 {dimension_numbers = #tpu.dot_dimension_numbers<[1], [0], [0], [1], [0, 0, 1, 1], [], []>} : vector<2x128xf32>, vector<128x64xf32>, vector<2x64xf32> -> vector<2x64xf32>
    %115 = arith.addf %111, %114 : vector<2x64xf32>
    %c0_103 = arith.constant 0 : index
    %c0_104 = arith.constant 0 : index
    %116 = vector.load %arg14[%c0_103, %c0_104] : memref<64x64xf32, #tpu.memory_space<vmem>>, vector<64x64xf32>
    %cst_105 = arith.constant dense<0.000000e+00> : vector<2x64xf32>
    %117 = tpu.matmul %44, %116, %cst_105 {dimension_numbers = #tpu.dot_dimension_numbers<[1], [0], [0], [1], [0, 0, 1, 1], [], []>} : vector<2x64xf32>, vector<64x64xf32>, vector<2x64xf32> -> vector<2x64xf32>
    %c0_106 = arith.constant 0 : index
    %c0_107 = arith.constant 0 : index
    %118 = vector.load %arg15[%c0_106, %c0_107] : memref<64x64xf32, #tpu.memory_space<vmem>>, vector<64x64xf32>
    %cst_108 = arith.constant dense<0.000000e+00> : vector<2x64xf32>
    %119 = tpu.matmul %115, %118, %cst_108 {dimension_numbers = #tpu.dot_dimension_numbers<[1], [0], [0], [1], [0, 0, 1, 1], [], []>} : vector<2x64xf32>, vector<64x64xf32>, vector<2x64xf32> -> vector<2x64xf32>
    %120 = arith.addf %117, %119 : vector<2x64xf32>
    %c0_109 = arith.constant 0 : index
    %c0_110 = arith.constant 0 : index
    %121 = vector.load %arg16[%c0_109, %c0_110] : memref<1x64xf32, #tpu.memory_space<vmem>>, vector<1x64xf32>
    %122 = vector.broadcast %121 : vector<1x64xf32> to vector<2x64xf32>
    %123 = arith.addf %120, %122 : vector<2x64xf32>
    %124 = arith.negf %123 : vector<2x64xf32>
    %125 = math.exp %124 : vector<2x64xf32>
    %cst_111 = arith.constant 1.000000e+00 : f32
    %126 = vector.broadcast %cst_111 : f32 to vector<2x64xf32>
    %127 = arith.addf %126, %125 : vector<2x64xf32>
    %128 = arith.divf %126, %127 : vector<2x64xf32>
    %129 = arith.subf %44, %115 : vector<2x64xf32>
    %130 = arith.mulf %128, %129 : vector<2x64xf32>
    %131 = arith.addf %115, %130 : vector<2x64xf32>
    %c0_112 = arith.constant 0 : index
    %c0_113 = arith.constant 0 : index
    %132 = vector.load %arg17[%c0_112, %c0_113] : memref<1x64xf32, #tpu.memory_space<vmem>>, vector<1x64xf32>
    %133 = vector.broadcast %132 : vector<1x64xf32> to vector<2x64xf32>
    %134 = arith.mulf %133, %1 : vector<2x64xf32>
    %135 = arith.addf %131, %134 : vector<2x64xf32>
    %c0_114 = arith.constant 0 : index
    %c0_115 = arith.constant 0 : index
    %c0_116 = arith.constant 0 : index
    %136 = vector.load %arg18[%c0_114, %c0_115, %c0_116] : memref<1x2x64xf32, #tpu.memory_space<vmem>>, vector<1x2x64xf32>
    %137 = vector.shape_cast %136 : vector<1x2x64xf32> to vector<2x64xf32>
    %138 = vector.shape_cast %135 : vector<2x64xf32> to vector<1x2x64xf32>
    tpu.vector_store %arg18[%c0_114, %c0_115, %c0_116], %138 {strides = array<i32>} : memref<1x2x64xf32, #tpu.memory_space<vmem>>, vector<1x2x64xf32>,
    return
  }
  func.func @transform_0(%arg0: i32) -> (i32, i32, i32) {
    %c0_i32 = arith.constant 0 : i32
    %c0_i32_0 = arith.constant 0 : i32
    %c0_i32_1 = arith.constant 0 : i32
    return %arg0, %c0_i32, %c0_i32_0 : i32, i32, i32
  }
  func.func @transform_1(%arg0: i32) -> (i32, i32) {
    %c0_i32 = arith.constant 0 : i32
    %c0_i32_0 = arith.constant 0 : i32
    %c0_i32_1 = arith.constant 0 : i32
    return %c0_i32, %c0_i32_0 : i32, i32
  }
  func.func @transform_2(%arg0: i32) -> (i32, i32) {
    %c0_i32 = arith.constant 0 : i32
    %c0_i32_0 = arith.constant 0 : i32
    %c0_i32_1 = arith.constant 0 : i32
    return %c0_i32, %c0_i32_0 : i32, i32
  }
  func.func @transform_3(%arg0: i32) -> (i32, i32, i32) {
    %c0_i32 = arith.constant 0 : i32
    %c0_i32_0 = arith.constant 0 : i32
    %c0_i32_1 = arith.constant 0 : i32
    %c0_i32_2 = arith.constant 0 : i32
    return %c0_i32, %c0_i32_0, %c0_i32_1 : i32, i32, i32
  }
  func.func @transform_4(%arg0: i32) -> (i32, i32, i32) {
    %c0_i32 = arith.constant 0 : i32
    %c0_i32_0 = arith.constant 0 : i32
    %c0_i32_1 = arith.constant 0 : i32
    %c0_i32_2 = arith.constant 0 : i32
    return %c0_i32, %c0_i32_0, %c0_i32_1 : i32, i32, i32
  }
  func.func @transform_5(%arg0: i32) -> (i32, i32, i32) {
    %c0_i32 = arith.constant 0 : i32
    %c0_i32_0 = arith.constant 0 : i32
    %c0_i32_1 = arith.constant 0 : i32
    %c0_i32_2 = arith.constant 0 : i32
    return %c0_i32, %c0_i32_0, %c0_i32_1 : i32, i32, i32
  }
  func.func @transform_6(%arg0: i32) -> (i32, i32) {
    %c0_i32 = arith.constant 0 : i32
    %c0_i32_0 = arith.constant 0 : i32
    %c0_i32_1 = arith.constant 0 : i32
    return %c0_i32, %c0_i32_0 : i32, i32
  }
  func.func @transform_7(%arg0: i32) -> (i32, i32, i32) {
    %c0_i32 = arith.constant 0 : i32
    %c0_i32_0 = arith.constant 0 : i32
    %c0_i32_1 = arith.constant 0 : i32
    %c0_i32_2 = arith.constant 0 : i32
    return %c0_i32, %c0_i32_0, %c0_i32_1 : i32, i32, i32
  }
  func.func @transform_8(%arg0: i32) -> (i32, i32) {
    %c0_i32 = arith.constant 0 : i32
    %c0_i32_0 = arith.constant 0 : i32
    %c0_i32_1 = arith.constant 0 : i32
    return %c0_i32, %c0_i32_0 : i32, i32
  }
  func.func @transform_9(%arg0: i32) -> (i32, i32, i32) {
    %c0_i32 = arith.constant 0 : i32
    %c0_i32_0 = arith.constant 0 : i32
    %c0_i32_1 = arith.constant 0 : i32
    %c0_i32_2 = arith.constant 0 : i32
    return %c0_i32, %c0_i32_0, %c0_i32_1 : i32, i32, i32
  }
  func.func @transform_10(%arg0: i32) -> (i32, i32) {
    %c0_i32 = arith.constant 0 : i32
    %c0_i32_0 = arith.constant 0 : i32
    %c0_i32_1 = arith.constant 0 : i32
    return %c0_i32, %c0_i32_0 : i32, i32
  }
  func.func @transform_11(%arg0: i32) -> (i32, i32, i32) {
    %c0_i32 = arith.constant 0 : i32
    %c0_i32_0 = arith.constant 0 : i32
    %c0_i32_1 = arith.constant 0 : i32
    %c0_i32_2 = arith.constant 0 : i32
    return %c0_i32, %c0_i32_0, %c0_i32_1 : i32, i32, i32
  }
  func.func @transform_12(%arg0: i32) -> (i32, i32) {
    %c0_i32 = arith.constant 0 : i32
    %c0_i32_0 = arith.constant 0 : i32
    %c0_i32_1 = arith.constant 0 : i32
    return %c0_i32, %c0_i32_0 : i32, i32
  }
  func.func @transform_13(%arg0: i32) -> (i32, i32) {
    %c0_i32 = arith.constant 0 : i32
    %c0_i32_0 = arith.constant 0 : i32
    %c0_i32_1 = arith.constant 0 : i32
    return %c0_i32, %c0_i32_0 : i32, i32
  }
  func.func @transform_14(%arg0: i32) -> (i32, i32) {
    %c0_i32 = arith.constant 0 : i32
    %c0_i32_0 = arith.constant 0 : i32
    %c0_i32_1 = arith.constant 0 : i32
    return %c0_i32, %c0_i32_0 : i32, i32
  }
  func.func @transform_15(%arg0: i32) -> (i32, i32) {
    %c0_i32 = arith.constant 0 : i32
    %c0_i32_0 = arith.constant 0 : i32
    %c0_i32_1 = arith.constant 0 : i32
    return %c0_i32, %c0_i32_0 : i32, i32
  }
  func.func @transform_16(%arg0: i32) -> (i32, i32) {
    %c0_i32 = arith.constant 0 : i32
    %c0_i32_0 = arith.constant 0 : i32
    %c0_i32_1 = arith.constant 0 : i32
    return %c0_i32, %c0_i32_0 : i32, i32
  }
  func.func @transform_17(%arg0: i32) -> (i32, i32, i32) {
    %c0_i32 = arith.constant 0 : i32
    %c0_i32_0 = arith.constant 0 : i32
    %c0_i32_1 = arith.constant 0 : i32
    return %arg0, %c0_i32, %c0_i32_0 : i32, i32, i32
  }
}

</mosaic_0001>

<llo_original>
// kernel: ode_func_forward_many.1
$region0: #{ode_func_forward_many.1}
  #allocation0 [shape = 'u32[]', space=smem, size = 0x4, offset = 0x4, fixed_abs, tag = 'smem constant byte address 0x4 - core index']
  #allocation1 [shape = 'u32[72,128]{1,0:T(1,128)}', space=vmem, size = 0x9000, scoped, tag = 'internal scratch']
  %s0 = inlined_call_operand.hbm [shape: f32[1,2,64], index: 0, kind: input, shape index: {}]
  %s1 = inlined_call_operand.vmem [shape: f32[64,64], index: 1, kind: input, shape index: {}]
  %s2 = inlined_call_operand.vmem [shape: f32[128,128], index: 2, kind: input, shape index: {}]
  %s3 = inlined_call_operand.vmem [shape: f32[2,64,64], index: 3, kind: input, shape index: {}]
  %s4 = inlined_call_operand.vmem [shape: f32[2,128,128], index: 4, kind: input, shape index: {}]
  %s5 = inlined_call_operand.vmem [shape: f32[3,64,128], index: 5, kind: input, shape index: {}]
  %s6 = inlined_call_operand.hbm [shape: f32[1,128], index: 6, kind: input, shape index: {}]
  %s7 = inlined_call_operand.vmem [shape: f32[3,128,64], index: 7, kind: input, shape index: {}]
  %s8 = inlined_call_operand.hbm [shape: f32[1,64], index: 8, kind: input, shape index: {}]
  %s9 = inlined_call_operand.vmem [shape: f32[3,64,128], index: 9, kind: input, shape index: {}]
  %s10 = inlined_call_operand.hbm [shape: f32[1,128], index: 10, kind: input, shape index: {}]
  %s11 = inlined_call_operand.vmem [shape: f32[3,128,64], index: 11, kind: input, shape index: {}]
  %s12 = inlined_call_operand.hbm [shape: f32[1,64], index: 12, kind: input, shape index: {}]
  %s13 = inlined_call_operand.hbm [shape: f32[64,64], index: 13, kind: input, shape index: {}]
  %s14 = inlined_call_operand.hbm [shape: f32[64,64], index: 14, kind: input, shape index: {}]
  %s15 = inlined_call_operand.vmem [shape: f32[1,64], index: 15, kind: input, shape index: {}]
  %s16 = inlined_call_operand.vmem [shape: f32[1,64], index: 16, kind: input, shape index: {}]
  %s17 = inlined_call_operand.hbm [shape: f32[1,2,64], index: 17, kind: output, shape index: {}]
  %s18 = sld [smem:[#allocation0]]
  $region106: #{ode_func_forward_many.1} parent=0
    _
  %s20 = ssub.s32 1, %s18
  %s21 = scalar_select 0, %s20, %s18
  $region1: #{ode_func_forward_many.1} parent=0
    #allocation2 [shape = 'u8[1024]{0}', space=vmem, size = 0x400, scoped, tag = 'input window, operand 0, single buffered']
    #allocation3 [shape = 's32[1]{0}', space=sflag, size = 0x4, scoped, tag = 'scoped memory for ode_func_forward_many.1']
    #allocation4 [shape = 's32[1]{0}', space=sflag, size = 0x4, scoped, tag = 'scoped memory for ode_func_forward_many.1']
    #allocation5 [shape = 'u8[512]{0}', space=vmem, size = 0x400, scoped, tag = 'input window, operand 6, single buffered']
    #allocation6 [shape = 's32[1]{0}', space=sflag, size = 0x4, scoped, tag = 'scoped memory for ode_func_forward_many.1']
    #allocation7 [shape = 'u8[512]{0}', space=vmem, size = 0x400, scoped, tag = 'input window, operand 8, single buffered']
    #allocation8 [shape = 'u8[512]{0}', space=vmem, size = 0x400, scoped, tag = 'input window, operand 10, single buffered']
    #allocation9 [shape = 's32[1]{0}', space=sflag, size = 0x4, scoped, tag = 'scoped memory for ode_func_forward_many.1']
    #allocation10 [shape = 'u8[512]{0}', space=vmem, size = 0x400, scoped, tag = 'input window, operand 12, single buffered']
    #allocation11 [shape = 'u8[32768]{0}', space=vmem, size = 0x8000, scoped, tag = 'input window, operand 13, single buffered']
    #allocation12 [shape = 's32[1]{0}', space=sflag, size = 0x4, scoped, tag = 'scoped memory for ode_func_forward_many.1']
    #allocation13 [shape = 'u8[32768]{0}', space=vmem, size = 0x8000, scoped, tag = 'input window, operand 14, single buffered']
    #allocation14 [shape = 'u8[1024]{0}', space=vmem, size = 0x400, scoped, tag = 'output window, operand 0, single buffered']
    %22 = vsyncpa [#allocation3], 0
    %23 = vsyncpa [#allocation6], 0
    %24 = vsyncpa [#allocation9], 0
    %25 = vsyncpa [#allocation12], 0
    %26 = vsyncpa [#allocation4], 0
    // Predicated region
    $region2: #{ode_func_forward_many.1} parent=1 // pred_check
      _
    $region3: #{ode_func_forward_many.1} parent=1 // pred_check_branch
      %28 = sbr.rel (0) target = $region5
    $region4: #{ode_func_forward_many.1} parent=1 // pred_region
      %30 = vsyncadd [#allocation3], 0
      %s32 = sshll.u32 %s0, 4
      %s33 = int_to_ptr.hbm [resolvable:$true] %s32
      %s34 = sshll.u32 [#allocation2], 4
      %s35 = int_to_ptr.vmem [resolvable:$true] %s34
      %37 = dma.hbm_to_vmem [thread:$0]  %s33, 32, %s35, [#allocation3]
    $region5: #{ode_func_forward_many.1} parent=1 // pred_fallthru
      _
    // Predicated region
    $region6: #{ode_func_forward_many.1} parent=1 // pred_check
      _
    $region7: #{ode_func_forward_many.1} parent=1 // pred_check_branch
      %39 = sbr.rel (0) target = $region9
    $region8: #{ode_func_forward_many.1} parent=1 // pred_region
      _
    $region9: #{ode_func_forward_many.1} parent=1 // pred_fallthru
      _
    // Predicated region
    $region10: #{ode_func_forward_many.1} parent=1 // pred_check
      _
    $region11: #{ode_func_forward_many.1} parent=1 // pred_check_branch
      %41 = sbr.rel (0) target = $region13
    $region12: #{ode_func_forward_many.1} parent=1 // pred_region
      _
    $region13: #{ode_func_forward_many.1} parent=1 // pred_fallthru
      _
    // Predicated region
    $region14: #{ode_func_forward_many.1} parent=1 // pred_check
      _
    $region15: #{ode_func_forward_many.1} parent=1 // pred_check_branch
      %43 = sbr.rel (0) target = $region17
    $region16: #{ode_func_forward_many.1} parent=1 // pred_region
      _
    $region17: #{ode_func_forward_many.1} parent=1 // pred_fallthru
      _
    // Predicated region
    $region18: #{ode_func_forward_many.1} parent=1 // pred_check
      _
    $region19: #{ode_func_forward_many.1} parent=1 // pred_check_branch
      %45 = sbr.rel (0) target = $region21
    $region20: #{ode_func_forward_many.1} parent=1 // pred_region
      _
    $region21: #{ode_func_forward_many.1} parent=1 // pred_fallthru
      _
    // Predicated region
    $region22: #{ode_func_forward_many.1} parent=1 // pred_check
      _
    $region23: #{ode_func_forward_many.1} parent=1 // pred_check_branch
      %47 = sbr.rel (0) target = $region25
    $region24: #{ode_func_forward_many.1} parent=1 // pred_region
      _
    $region25: #{ode_func_forward_many.1} parent=1 // pred_fallthru
      _
    // Predicated region
    $region26: #{ode_func_forward_many.1} parent=1 // pred_check
      _
    $region27: #{ode_func_forward_many.1} parent=1 // pred_check_branch
      %49 = sbr.rel (0) target = $region29
    $region28: #{ode_func_forward_many.1} parent=1 // pred_region
      %51 = vsyncadd [#allocation6], 0
      %s53 = sshll.u32 %s6, 4
      %s54 = int_to_ptr.hbm [resolvable:$true] %s53
      %s55 = sshll.u32 [#allocation5], 4
      %s56 = int_to_ptr.vmem [resolvable:$true] %s55
      %58 = dma.hbm_to_vmem [thread:$0]  %s54, 16, %s56, [#allocation6]
    $region29: #{ode_func_forward_many.1} parent=1 // pred_fallthru
      _
    // Predicated region
    $region30: #{ode_func_forward_many.1} parent=1 // pred_check
      _
    $region31: #{ode_func_forward_many.1} parent=1 // pred_check_branch
      %60 = sbr.rel (0) target = $region33
    $region32: #{ode_func_forward_many.1} parent=1 // pred_region
      _
    $region33: #{ode_func_forward_many.1} parent=1 // pred_fallthru
      _
    // Predicated region
    $region34: #{ode_func_forward_many.1} parent=1 // pred_check
      _
    $region35: #{ode_func_forward_many.1} parent=1 // pred_check_branch
      %62 = sbr.rel (0) target = $region37
    $region36: #{ode_func_forward_many.1} parent=1 // pred_region
      %64 = vsyncadd [#allocation6], 0
      %s66 = sshll.u32 %s8, 4
      %s67 = int_to_ptr.hbm [resolvable:$true] %s66
      %s68 = sshll.u32 [#allocation7], 4
      %s69 = int_to_ptr.vmem [resolvable:$true] %s68
      %71 = dma.hbm_to_vmem [thread:$0]  %s67, 16, %s69, [#allocation6]
    $region37: #{ode_func_forward_many.1} parent=1 // pred_fallthru
      _
    // Predicated region
    $region38: #{ode_func_forward_many.1} parent=1 // pred_check
      _
    $region39: #{ode_func_forward_many.1} parent=1 // pred_check_branch
      %73 = sbr.rel (0) target = $region41
    $region40: #{ode_func_forward_many.1} parent=1 // pred_region
      _
    $region41: #{ode_func_forward_many.1} parent=1 // pred_fallthru
      _
    // Predicated region
    $region42: #{ode_func_forward_many.1} parent=1 // pred_check
      _
    $region43: #{ode_func_forward_many.1} parent=1 // pred_check_branch
      %75 = sbr.rel (0) target = $region45
    $region44: #{ode_func_forward_many.1} parent=1 // pred_region
      %77 = vsyncadd [#allocation9], 0
      %s79 = sshll.u32 %s10, 4
      %s80 = int_to_ptr.hbm [resolvable:$true] %s79
      %s81 = sshll.u32 [#allocation8], 4
      %s82 = int_to_ptr.vmem [resolvable:$true] %s81
      %84 = dma.hbm_to_vmem [thread:$0]  %s80, 16, %s82, [#allocation9]
    $region45: #{ode_func_forward_many.1} parent=1 // pred_fallthru
      _
    // Predicated region
    $region46: #{ode_func_forward_many.1} parent=1 // pred_check
      _
    $region47: #{ode_func_forward_many.1} parent=1 // pred_check_branch
      %86 = sbr.rel (0) target = $region49
    $region48: #{ode_func_forward_many.1} parent=1 // pred_region
      _
    $region49: #{ode_func_forward_many.1} parent=1 // pred_fallthru
      _
    // Predicated region
    $region50: #{ode_func_forward_many.1} parent=1 // pred_check
      _
    $region51: #{ode_func_forward_many.1} parent=1 // pred_check_branch
      %88 = sbr.rel (0) target = $region53
    $region52: #{ode_func_forward_many.1} parent=1 // pred_region
      %90 = vsyncadd [#allocation9], 0
      %s92 = sshll.u32 %s12, 4
      %s93 = int_to_ptr.hbm [resolvable:$true] %s92
      %s94 = sshll.u32 [#allocation10], 4
      %s95 = int_to_ptr.vmem [resolvable:$true] %s94
      %97 = dma.hbm_to_vmem [thread:$0]  %s93, 16, %s95, [#allocation9]
    $region53: #{ode_func_forward_many.1} parent=1 // pred_fallthru
      _
    // Predicated region
    $region54: #{ode_func_forward_many.1} parent=1 // pred_check
      _
    $region55: #{ode_func_forward_many.1} parent=1 // pred_check_branch
      %99 = sbr.rel (0) target = $region57
    $region56: #{ode_func_forward_many.1} parent=1 // pred_region
      %101 = vsyncadd [#allocation12], 0
      %s102 = sshll.u32 %s13, 4
      %s103 = int_to_ptr.hbm [resolvable:$true] %s102
      %s104 = sshll.u32 [#allocation11], 4
      %s105 = int_to_ptr.vmem [resolvable:$true] %s104
      %110 = dma.hbm_to_vmem [thread:$0]  %s103, 1024, %s105, [#allocation12], 128, 128, 8
    $region57: #{ode_func_forward_many.1} parent=1 // pred_fallthru
      _
    // Predicated region
    $region58: #{ode_func_forward_many.1} parent=1 // pred_check
      _
    $region59: #{ode_func_forward_many.1} parent=1 // pred_check_branch
      %112 = sbr.rel (0) target = $region61
    $region60: #{ode_func_forward_many.1} parent=1 // pred_region
      %114 = vsyncadd [#allocation12], 0
      %s115 = sshll.u32 %s14, 4
      %s116 = int_to_ptr.hbm [resolvable:$true] %s115
      %s117 = sshll.u32 [#allocation13], 4
      %s118 = int_to_ptr.vmem [resolvable:$true] %s117
      %123 = dma.hbm_to_vmem [thread:$0]  %s116, 1024, %s118, [#allocation12], 128, 128, 8
    $region61: #{ode_func_forward_many.1} parent=1 // pred_fallthru
      _
    // Predicated region
    $region62: #{ode_func_forward_many.1} parent=1 // pred_check
      _
    $region63: #{ode_func_forward_many.1} parent=1 // pred_check_branch
      %125 = sbr.rel (0) target = $region65
    $region64: #{ode_func_forward_many.1} parent=1 // pred_region
      _
    $region65: #{ode_func_forward_many.1} parent=1 // pred_fallthru
      _
    // Predicated region
    $region66: #{ode_func_forward_many.1} parent=1 // pred_check
      _
    $region67: #{ode_func_forward_many.1} parent=1 // pred_check_branch
      %127 = sbr.rel (0) target = $region69
    $region68: #{ode_func_forward_many.1} parent=1 // pred_region
      _
    $region69: #{ode_func_forward_many.1} parent=1 // pred_fallthru
      _
    // Predicated region
    $region70: #{ode_func_forward_many.1} parent=1 // pred_check
      _
    $region71: #{ode_func_forward_many.1} parent=1 // pred_check_branch
      %129 = sbr.rel (0) target = $region73
    $region72: #{ode_func_forward_many.1} parent=1 // pred_region
      %131 = dma.done [#allocation3], 32
    $region73: #{ode_func_forward_many.1} parent=1 // pred_fallthru
      _
    // Predicated region
    $region74: #{ode_func_forward_many.1} parent=1 // pred_check
      _
    $region75: #{ode_func_forward_many.1} parent=1 // pred_check_branch
      %133 = sbr.rel (0) target = $region77
    $region76: #{ode_func_forward_many.1} parent=1 // pred_region
      %135 = dma.done [#allocation6], 16
    $region77: #{ode_func_forward_many.1} parent=1 // pred_fallthru
      _
    // Predicated region
    $region78: #{ode_func_forward_many.1} parent=1 // pred_check
      _
    $region79: #{ode_func_forward_many.1} parent=1 // pred_check_branch
      %137 = sbr.rel (0) target = $region81
    $region80: #{ode_func_forward_many.1} parent=1 // pred_region
      %139 = dma.done [#allocation6], 16
    $region81: #{ode_func_forward_many.1} parent=1 // pred_fallthru
      _
    // Predicated region
    $region82: #{ode_func_forward_many.1} parent=1 // pred_check
      _
    $region83: #{ode_func_forward_many.1} parent=1 // pred_check_branch
      %141 = sbr.rel (0) target = $region85
    $region84: #{ode_func_forward_many.1} parent=1 // pred_region
      %143 = dma.done [#allocation9], 16
    $region85: #{ode_func_forward_many.1} parent=1 // pred_fallthru
      _
    // Predicated region
    $region86: #{ode_func_forward_many.1} parent=1 // pred_check
      _
    $region87: #{ode_func_forward_many.1} parent=1 // pred_check_branch
      %145 = sbr.rel (0) target = $region89
    $region88: #{ode_func_forward_many.1} parent=1 // pred_region
      %147 = dma.done [#allocation9], 16
    $region89: #{ode_func_forward_many.1} parent=1 // pred_fallthru
      _
    // Predicated region
    $region90: #{ode_func_forward_many.1} parent=1 // pred_check
      _
    $region91: #{ode_func_forward_many.1} parent=1 // pred_check_branch
      %149 = sbr.rel (0) target = $region93
    $region92: #{ode_func_forward_many.1} parent=1 // pred_region
      %151 = dma.done [#allocation12], 1024
    $region93: #{ode_func_forward_many.1} parent=1 // pred_fallthru
      _
    // Predicated region
    $region94: #{ode_func_forward_many.1} parent=1 // pred_check
      _
    $region95: #{ode_func_forward_many.1} parent=1 // pred_check_branch
      %153 = sbr.rel (0) target = $region97
    $region96: #{ode_func_forward_many.1} parent=1 // pred_region
      %155 = dma.done [#allocation12], 1024
    $region97: #{ode_func_forward_many.1} parent=1 // pred_fallthru
      _
    %v156 = vld [vmem:[#allocation2] sm:$0x3]
    %v157 = vld [vmem:[%s1] sm:$0xff]
    %v158 = vld [vmem:[%s1 + $0x8] sm:$0xff]
    %v159 = vld [vmem:[%s1 + $0x10] sm:$0xff]
    %v160 = vld [vmem:[%s1 + $0x18] sm:$0xff]
    %v161 = vld [vmem:[%s1 + $0x20] sm:$0xff]
    %v162 = vld [vmem:[%s1 + $0x28] sm:$0xff]
    %v163 = vld [vmem:[%s1 + $0x30] sm:$0xff]
    %v164 = vld [vmem:[%s1 + $0x38] sm:$0xff]
    %vm165 = vcmask 523264
    %v167 = vsel %vm165, %v156, 0
    %169 = vmatpush.msra.mxu0 0.0
    %170 = vmatpush.msra.mxu0 0.0
    %171 = vmatpush.msra.mxu0 0.0
    %172 = vmatpush.msra.mxu0 0.0
    %173 = vmatpush.msra.mxu0 0.0
    %174 = vmatpush.msra.mxu0 0.0
    %175 = vmatpush.msra.mxu0 0.0
    %176 = vmatpush.msra.mxu0 0.0
    %177 = vmatpush.msra.mxu0 %v164
    %178 = vmatpush.msra.mxu0 %v163
    %179 = vmatpush.msra.mxu0 %v162
    %180 = vmatpush.msra.mxu0 %v161
    %181 = vmatpush.msra.mxu0 %v160
    %182 = vmatpush.msra.mxu0 %v159
    %183 = vmatpush.msra.mxu0 %v158
    %184 = vmatpush.msra.mxu0 %v157
    %185 = vmatmul.f32.gmra.mxu0 %v167
    %v186 = vpop.f32.mrf.mxu0
    %v187 = vadd.f32 0.0, %v186
    %188 = vdwg.mxu0
    %v190 = vsel %vm165, %v187, 0
    %192 = vmatpush.msra.mxu0 0.0
    %193 = vmatpush.msra.mxu0 0.0
    %194 = vmatpush.msra.mxu0 0.0
    %195 = vmatpush.msra.mxu0 0.0
    %196 = vmatpush.msra.mxu0 0.0
    %197 = vmatpush.msra.mxu0 0.0
    %198 = vmatpush.msra.mxu0 0.0
    %199 = vmatpush.msra.mxu0 0.0
    %200 = vmatpush.msra.mxu0 %v164
    %201 = vmatpush.msra.mxu0 %v163
    %202 = vmatpush.msra.mxu0 %v162
    %203 = vmatpush.msra.mxu0 %v161
    %204 = vmatpush.msra.mxu0 %v160
    %205 = vmatpush.msra.mxu0 %v159
    %206 = vmatpush.msra.mxu0 %v158
    %207 = vmatpush.msra.mxu0 %v157
    %208 = vmatmul.f32.gmra.mxu0 %v190
    %v209 = vpop.f32.mrf.mxu0
    %v210 = vadd.f32 0.0, %v209
    %211 = vdwg.mxu0
    %v212 = vmul.f32 %v210, 2.0
    %v213 = vsub.f32 %v212, %v156
    %v214 = vld [vmem:[#allocation5] sm:$0x1]
    %v215 = vld [vmem:[%s5] sm:$0xff]
    %v216 = vld [vmem:[%s5 + $0x8] sm:$0xff]
    %v217 = vld [vmem:[%s5 + $0x10] sm:$0xff]
    %v218 = vld [vmem:[%s5 + $0x18] sm:$0xff]
    %v219 = vld [vmem:[%s5 + $0x20] sm:$0xff]
    %v220 = vld [vmem:[%s5 + $0x28] sm:$0xff]
    %v221 = vld [vmem:[%s5 + $0x30] sm:$0xff]
    %v222 = vld [vmem:[%s5 + $0x38] sm:$0xff]
    %223 = vmatpush.msra.mxu0 0.0
    %224 = vmatpush.msra.mxu0 0.0
    %225 = vmatpush.msra.mxu0 0.0
    %226 = vmatpush.msra.mxu0 0.0
    %227 = vmatpush.msra.mxu0 0.0
    %228 = vmatpush.msra.mxu0 0.0
    %229 = vmatpush.msra.mxu0 0.0
    %230 = vmatpush.msra.mxu0 0.0
    %231 = vmatpush.msra.mxu0 %v222
    %232 = vmatpush.msra.mxu0 %v221
    %233 = vmatpush.msra.mxu0 %v220
    %234 = vmatpush.msra.mxu0 %v219
    %235 = vmatpush.msra.mxu0 %v218
    %236 = vmatpush.msra.mxu0 %v217
    %237 = vmatpush.msra.mxu0 %v216
    %238 = vmatpush.msra.mxu0 %v215
    %239 = vmatmul.f32.gmra.mxu0 %v167
    %v240 = vpop.f32.mrf.mxu0
    %v241 = vadd.f32 0.0, %v240
    %242 = vdwg.mxu0
    %v244 = vperm.slane %v214, 0
    %v246 = vadd.f32 %v244, %v241
    %s247 = scalar_lea.vmem %s5, 64
    %v248 = vld [vmem:[%s247] sm:$0xff]
    %v249 = vld [vmem:[%s247 + $0x8] sm:$0xff]
    %v250 = vld [vmem:[%s247 + $0x10] sm:$0xff]
    %v251 = vld [vmem:[%s247 + $0x18] sm:$0xff]
    %v252 = vld [vmem:[%s247 + $0x20] sm:$0xff]
    %v253 = vld [vmem:[%s247 + $0x28] sm:$0xff]
    %v254 = vld [vmem:[%s247 + $0x30] sm:$0xff]
    %v255 = vld [vmem:[%s247 + $0x38] sm:$0xff]
    %256 = vmatpush.msra.mxu0 0.0
    %257 = vmatpush.msra.mxu0 0.0
    %258 = vmatpush.msra.mxu0 0.0
    %259 = vmatpush.msra.mxu0 0.0
    %260 = vmatpush.msra.mxu0 0.0
    %261 = vmatpush.msra.mxu0 0.0
    %262 = vmatpush.msra.mxu0 0.0
    %263 = vmatpush.msra.mxu0 0.0
    %264 = vmatpush.msra.mxu0 %v255
    %265 = vmatpush.msra.mxu0 %v254
    %266 = vmatpush.msra.mxu0 %v253
    %267 = vmatpush.msra.mxu0 %v252
    %268 = vmatpush.msra.mxu0 %v251
    %269 = vmatpush.msra.mxu0 %v250
    %270 = vmatpush.msra.mxu0 %v249
    %271 = vmatpush.msra.mxu0 %v248
    %272 = vmatmul.f32.gmra.mxu0 %v190
    %v273 = vpop.f32.mrf.mxu0
    %v274 = vadd.f32 0.0, %v273
    %275 = vdwg.mxu0
    %v276 = vadd.f32 %v246, %v274
    %s277 = scalar_lea.vmem %s5, 128
    %v278 = vld [vmem:[%s277] sm:$0xff]
    %v279 = vld [vmem:[%s277 + $0x8] sm:$0xff]
    %v280 = vld [vmem:[%s277 + $0x10] sm:$0xff]
    %v281 = vld [vmem:[%s277 + $0x18] sm:$0xff]
    %v282 = vld [vmem:[%s277 + $0x20] sm:$0xff]
    %v283 = vld [vmem:[%s277 + $0x28] sm:$0xff]
    %v284 = vld [vmem:[%s277 + $0x30] sm:$0xff]
    %v285 = vld [vmem:[%s277 + $0x38] sm:$0xff]
    %v287 = vsel %vm165, %v213, 0
    %289 = vmatpush.msra.mxu0 0.0
    %290 = vmatpush.msra.mxu0 0.0
    %291 = vmatpush.msra.mxu0 0.0
    %292 = vmatpush.msra.mxu0 0.0
    %293 = vmatpush.msra.mxu0 0.0
    %294 = vmatpush.msra.mxu0 0.0
    %295 = vmatpush.msra.mxu0 0.0
    %296 = vmatpush.msra.mxu0 0.0
    %297 = vmatpush.msra.mxu0 %v285
    %298 = vmatpush.msra.mxu0 %v284
    %299 = vmatpush.msra.mxu0 %v283
    %300 = vmatpush.msra.mxu0 %v282
    %301 = vmatpush.msra.mxu0 %v281
    %302 = vmatpush.msra.mxu0 %v280
    %303 = vmatpush.msra.mxu0 %v279
    %304 = vmatpush.msra.mxu0 %v278
    %305 = vmatmul.f32.gmra.mxu0 %v287
    %v306 = vpop.f32.mrf.mxu0
    %v307 = vadd.f32 0.0, %v306
    %308 = vdwg.mxu0
    %v309 = vadd.f32 %v276, %v307
    %v310 = vtanh.pop %v309
    %v311 = vld [vmem:[%s2] sm:$0xff]
    %v312 = vld [vmem:[%s2 + $0x8] sm:$0xff]
    %v313 = vld [vmem:[%s2 + $0x10] sm:$0xff]
    %v314 = vld [vmem:[%s2 + $0x18] sm:$0xff]
    %v315 = vld [vmem:[%s2 + $0x20] sm:$0xff]
    %v316 = vld [vmem:[%s2 + $0x28] sm:$0xff]
    %v317 = vld [vmem:[%s2 + $0x30] sm:$0xff]
    %v318 = vld [vmem:[%s2 + $0x38] sm:$0xff]
    %v319 = vld [vmem:[%s2 + $0x40] sm:$0xff]
    %v320 = vld [vmem:[%s2 + $0x48] sm:$0xff]
    %v321 = vld [vmem:[%s2 + $0x50] sm:$0xff]
    %v322 = vld [vmem:[%s2 + $0x58] sm:$0xff]
    %v323 = vld [vmem:[%s2 + $0x60] sm:$0xff]
    %v324 = vld [vmem:[%s2 + $0x68] sm:$0xff]
    %v325 = vld [vmem:[%s2 + $0x70] sm:$0xff]
    %v326 = vld [vmem:[%s2 + $0x78] sm:$0xff]
    %327 = vmatpush.msra.mxu0 %v326
    %328 = vmatpush.msra.mxu0 %v325
    %329 = vmatpush.msra.mxu0 %v324
    %330 = vmatpush.msra.mxu0 %v323
    %331 = vmatpush.msra.mxu0 %v322
    %332 = vmatpush.msra.mxu0 %v321
    %333 = vmatpush.msra.mxu0 %v320
    %334 = vmatpush.msra.mxu0 %v319
    %335 = vmatpush.msra.mxu0 %v318
    %336 = vmatpush.msra.mxu0 %v317
    %337 = vmatpush.msra.mxu0 %v316
    %338 = vmatpush.msra.mxu0 %v315
    %339 = vmatpush.msra.mxu0 %v314
    %340 = vmatpush.msra.mxu0 %v313
    %341 = vmatpush.msra.mxu0 %v312
    %342 = vmatpush.msra.mxu0 %v311
    %343 = vmatmul.f32.gmra.mxu0 %v310
    %v344 = vpop.f32.mrf.mxu0
    %v345 = vadd.f32 0.0, %v344
    %346 = vdwg.mxu0
    %347 = vmatpush.msra.mxu0 %v326
    %348 = vmatpush.msra.mxu0 %v325
    %349 = vmatpush.msra.mxu0 %v324
    %350 = vmatpush.msra.mxu0 %v323
    %351 = vmatpush.msra.mxu0 %v322
    %352 = vmatpush.msra.mxu0 %v321
    %353 = vmatpush.msra.mxu0 %v320
    %354 = vmatpush.msra.mxu0 %v319
    %355 = vmatpush.msra.mxu0 %v318
    %356 = vmatpush.msra.mxu0 %v317
    %357 = vmatpush.msra.mxu0 %v316
    %358 = vmatpush.msra.mxu0 %v315
    %359 = vmatpush.msra.mxu0 %v314
    %360 = vmatpush.msra.mxu0 %v313
    %361 = vmatpush.msra.mxu0 %v312
    %362 = vmatpush.msra.mxu0 %v311
    %363 = vmatmul.f32.gmra.mxu0 %v345
    %v364 = vpop.f32.mrf.mxu0
    %v365 = vadd.f32 0.0, %v364
    %366 = vdwg.mxu0
    %v367 = vmul.f32 %v365, 2.0
    %v368 = vsub.f32 %v367, %v310
    %v369 = vld [vmem:[#allocation7] sm:$0x1]
    %v370 = vld [vmem:[%s7] sm:$0xff]
    %v371 = vld [vmem:[%s7 + $0x8] sm:$0xff]
    %v372 = vld [vmem:[%s7 + $0x10] sm:$0xff]
    %v373 = vld [vmem:[%s7 + $0x18] sm:$0xff]
    %v374 = vld [vmem:[%s7 + $0x20] sm:$0xff]
    %v375 = vld [vmem:[%s7 + $0x28] sm:$0xff]
    %v376 = vld [vmem:[%s7 + $0x30] sm:$0xff]
    %v377 = vld [vmem:[%s7 + $0x38] sm:$0xff]
    %v378 = vld [vmem:[%s7 + $0x40] sm:$0xff]
    %v379 = vld [vmem:[%s7 + $0x48] sm:$0xff]
    %v380 = vld [vmem:[%s7 + $0x50] sm:$0xff]
    %v381 = vld [vmem:[%s7 + $0x58] sm:$0xff]
    %v382 = vld [vmem:[%s7 + $0x60] sm:$0xff]
    %v383 = vld [vmem:[%s7 + $0x68] sm:$0xff]
    %v384 = vld [vmem:[%s7 + $0x70] sm:$0xff]
    %v385 = vld [vmem:[%s7 + $0x78] sm:$0xff]
    %386 = vmatpush.msra.mxu0 %v385
    %387 = vmatpush.msra.mxu0 %v384
    %388 = vmatpush.msra.mxu0 %v383
    %389 = vmatpush.msra.mxu0 %v382
    %390 = vmatpush.msra.mxu0 %v381
    %391 = vmatpush.msra.mxu0 %v380
    %392 = vmatpush.msra.mxu0 %v379
    %393 = vmatpush.msra.mxu0 %v378
    %394 = vmatpush.msra.mxu0 %v377
    %395 = vmatpush.msra.mxu0 %v376
    %396 = vmatpush.msra.mxu0 %v375
    %397 = vmatpush.msra.mxu0 %v374
    %398 = vmatpush.msra.mxu0 %v373
    %399 = vmatpush.msra.mxu0 %v372
    %400 = vmatpush.msra.mxu0 %v371
    %401 = vmatpush.msra.mxu0 %v370
    %402 = vmatmul.f32.gmra.mxu0 %v310
    %v403 = vpop.f32.mrf.mxu0
    %v404 = vadd.f32 0.0, %v403
    %405 = vdwg.mxu0
    %v407 = vperm.slane %v369, 0
    %v409 = vadd.f32 %v407, %v404
    %s410 = scalar_lea.vmem %s7, 128
    %v411 = vld [vmem:[%s410] sm:$0xff]
    %v412 = vld [vmem:[%s410 + $0x8] sm:$0xff]
    %v413 = vld [vmem:[%s410 + $0x10] sm:$0xff]
    %v414 = vld [vmem:[%s410 + $0x18] sm:$0xff]
    %v415 = vld [vmem:[%s410 + $0x20] sm:$0xff]
    %v416 = vld [vmem:[%s410 + $0x28] sm:$0xff]
    %v417 = vld [vmem:[%s410 + $0x30] sm:$0xff]
    %v418 = vld [vmem:[%s410 + $0x38] sm:$0xff]
    %v419 = vld [vmem:[%s410 + $0x40] sm:$0xff]
    %v420 = vld [vmem:[%s410 + $0x48] sm:$0xff]
    %v421 = vld [vmem:[%s410 + $0x50] sm:$0xff]
    %v422 = vld [vmem:[%s410 + $0x58] sm:$0xff]
    %v423 = vld [vmem:[%s410 + $0x60] sm:$0xff]
    %v424 = vld [vmem:[%s410 + $0x68] sm:$0xff]
    %v425 = vld [vmem:[%s410 + $0x70] sm:$0xff]
    %v426 = vld [vmem:[%s410 + $0x78] sm:$0xff]
    %427 = vmatpush.msra.mxu0 %v426
    %428 = vmatpush.msra.mxu0 %v425
    %429 = vmatpush.msra.mxu0 %v424
    %430 = vmatpush.msra.mxu0 %v423
    %431 = vmatpush.msra.mxu0 %v422
    %432 = vmatpush.msra.mxu0 %v421
    %433 = vmatpush.msra.mxu0 %v420
    %434 = vmatpush.msra.mxu0 %v419
    %435 = vmatpush.msra.mxu0 %v418
    %436 = vmatpush.msra.mxu0 %v417
    %437 = vmatpush.msra.mxu0 %v416
    %438 = vmatpush.msra.mxu0 %v415
    %439 = vmatpush.msra.mxu0 %v414
    %440 = vmatpush.msra.mxu0 %v413
    %441 = vmatpush.msra.mxu0 %v412
    %442 = vmatpush.msra.mxu0 %v411
    %443 = vmatmul.f32.gmra.mxu0 %v345
    %v444 = vpop.f32.mrf.mxu0
    %v445 = vadd.f32 0.0, %v444
    %446 = vdwg.mxu0
    %v447 = vadd.f32 %v409, %v445
    %s448 = scalar_lea.vmem %s7, 256
    %v449 = vld [vmem:[%s448] sm:$0xff]
    %v450 = vld [vmem:[%s448 + $0x8] sm:$0xff]
    %v451 = vld [vmem:[%s448 + $0x10] sm:$0xff]
    %v452 = vld [vmem:[%s448 + $0x18] sm:$0xff]
    %v453 = vld [vmem:[%s448 + $0x20] sm:$0xff]
    %v454 = vld [vmem:[%s448 + $0x28] sm:$0xff]
    %v455 = vld [vmem:[%s448 + $0x30] sm:$0xff]
    %v456 = vld [vmem:[%s448 + $0x38] sm:$0xff]
    %v457 = vld [vmem:[%s448 + $0x40] sm:$0xff]
    %v458 = vld [vmem:[%s448 + $0x48] sm:$0xff]
    %v459 = vld [vmem:[%s448 + $0x50] sm:$0xff]
    %v460 = vld [vmem:[%s448 + $0x58] sm:$0xff]
    %v461 = vld [vmem:[%s448 + $0x60] sm:$0xff]
    %v462 = vld [vmem:[%s448 + $0x68] sm:$0xff]
    %v463 = vld [vmem:[%s448 + $0x70] sm:$0xff]
    %v464 = vld [vmem:[%s448 + $0x78] sm:$0xff]
    %465 = vmatpush.msra.mxu0 %v464
    %466 = vmatpush.msra.mxu0 %v463
    %467 = vmatpush.msra.mxu0 %v462
    %468 = vmatpush.msra.mxu0 %v461
    %469 = vmatpush.msra.mxu0 %v460
    %470 = vmatpush.msra.mxu0 %v459
    %471 = vmatpush.msra.mxu0 %v458
    %472 = vmatpush.msra.mxu0 %v457
    %473 = vmatpush.msra.mxu0 %v456
    %474 = vmatpush.msra.mxu0 %v455
    %475 = vmatpush.msra.mxu0 %v454
    %476 = vmatpush.msra.mxu0 %v453
    %477 = vmatpush.msra.mxu0 %v452
    %478 = vmatpush.msra.mxu0 %v451
    %479 = vmatpush.msra.mxu0 %v450
    %480 = vmatpush.msra.mxu0 %v449
    %481 = vmatmul.f32.gmra.mxu0 %v368
    %v482 = vpop.f32.mrf.mxu0
    %v483 = vadd.f32 0.0, %v482
    %484 = vdwg.mxu0
    %v485 = vadd.f32 %v447, %v483
    %v486 = vld [vmem:[%s3] sm:$0xff]
    %v487 = vld [vmem:[%s3 + $0x8] sm:$0xff]
    %v488 = vld [vmem:[%s3 + $0x10] sm:$0xff]
    %v489 = vld [vmem:[%s3 + $0x18] sm:$0xff]
    %v490 = vld [vmem:[%s3 + $0x20] sm:$0xff]
    %v491 = vld [vmem:[%s3 + $0x28] sm:$0xff]
    %v492 = vld [vmem:[%s3 + $0x30] sm:$0xff]
    %v493 = vld [vmem:[%s3 + $0x38] sm:$0xff]
    %494 = vmatpush.msra.mxu0 0.0
    %495 = vmatpush.msra.mxu0 0.0
    %496 = vmatpush.msra.mxu0 0.0
    %497 = vmatpush.msra.mxu0 0.0
    %498 = vmatpush.msra.mxu0 0.0
    %499 = vmatpush.msra.mxu0 0.0
    %500 = vmatpush.msra.mxu0 0.0
    %501 = vmatpush.msra.mxu0 0.0
    %502 = vmatpush.msra.mxu0 %v493
    %503 = vmatpush.msra.mxu0 %v492
    %504 = vmatpush.msra.mxu0 %v491
    %505 = vmatpush.msra.mxu0 %v490
    %506 = vmatpush.msra.mxu0 %v489
    %507 = vmatpush.msra.mxu0 %v488
    %508 = vmatpush.msra.mxu0 %v487
    %509 = vmatpush.msra.mxu0 %v486
    %510 = vmatmul.f32.gmra.mxu0 %v167
    %v511 = vpop.f32.mrf.mxu0
    %v512 = vadd.f32 0.0, %v511
    %513 = vdwg.mxu0
    %s514 = scalar_lea.vmem %s3, 64
    %v515 = vld [vmem:[%s514] sm:$0xff]
    %v516 = vld [vmem:[%s514 + $0x8] sm:$0xff]
    %v517 = vld [vmem:[%s514 + $0x10] sm:$0xff]
    %v518 = vld [vmem:[%s514 + $0x18] sm:$0xff]
    %v519 = vld [vmem:[%s514 + $0x20] sm:$0xff]
    %v520 = vld [vmem:[%s514 + $0x28] sm:$0xff]
    %v521 = vld [vmem:[%s514 + $0x30] sm:$0xff]
    %v522 = vld [vmem:[%s514 + $0x38] sm:$0xff]
    %v523 = vrot.slane %v156, 1
    %v524 = vsel %vm165, %v523, 0
    %526 = vmatpush.msra.mxu0 0.0
    %527 = vmatpush.msra.mxu0 0.0
    %528 = vmatpush.msra.mxu0 0.0
    %529 = vmatpush.msra.mxu0 0.0
    %530 = vmatpush.msra.mxu0 0.0
    %531 = vmatpush.msra.mxu0 0.0
    %532 = vmatpush.msra.mxu0 0.0
    %533 = vmatpush.msra.mxu0 0.0
    %534 = vmatpush.msra.mxu0 %v522
    %535 = vmatpush.msra.mxu0 %v521
    %536 = vmatpush.msra.mxu0 %v520
    %537 = vmatpush.msra.mxu0 %v519
    %538 = vmatpush.msra.mxu0 %v518
    %539 = vmatpush.msra.mxu0 %v517
    %540 = vmatpush.msra.mxu0 %v516
    %541 = vmatpush.msra.mxu0 %v515
    %542 = vmatmul.f32.gmra.mxu0 %v524
    %v543 = vpop.f32.mrf.mxu0
    %v544 = vadd.f32 0.0, %v543
    %545 = vdwg.mxu0
    %v547 = vrot.slane %v544, 7
    %vm549 = vcmask 1040384
    %v550 = vsel %vm549, %v512, %v547
    %v552 = vsel %vm165, %v550, 0
    %554 = vmatpush.msra.mxu0 0.0
    %555 = vmatpush.msra.mxu0 0.0
    %556 = vmatpush.msra.mxu0 0.0
    %557 = vmatpush.msra.mxu0 0.0
    %558 = vmatpush.msra.mxu0 0.0
    %559 = vmatpush.msra.mxu0 0.0
    %560 = vmatpush.msra.mxu0 0.0
    %561 = vmatpush.msra.mxu0 0.0
    %562 = vmatpush.msra.mxu0 %v493
    %563 = vmatpush.msra.mxu0 %v492
    %564 = vmatpush.msra.mxu0 %v491
    %565 = vmatpush.msra.mxu0 %v490
    %566 = vmatpush.msra.mxu0 %v489
    %567 = vmatpush.msra.mxu0 %v488
    %568 = vmatpush.msra.mxu0 %v487
    %569 = vmatpush.msra.mxu0 %v486
    %570 = vmatmul.f32.gmra.mxu0 %v552
    %v571 = vpop.f32.mrf.mxu0
    %v572 = vadd.f32 0.0, %v571
    %573 = vdwg.mxu0
    %v574 = vrot.slane %v550, 1
    %v575 = vsel %vm165, %v574, 0
    %577 = vmatpush.msra.mxu0 0.0
    %578 = vmatpush.msra.mxu0 0.0
    %579 = vmatpush.msra.mxu0 0.0
    %580 = vmatpush.msra.mxu0 0.0
    %581 = vmatpush.msra.mxu0 0.0
    %582 = vmatpush.msra.mxu0 0.0
    %583 = vmatpush.msra.mxu0 0.0
    %584 = vmatpush.msra.mxu0 0.0
    %585 = vmatpush.msra.mxu0 %v522
    %586 = vmatpush.msra.mxu0 %v521
    %587 = vmatpush.msra.mxu0 %v520
    %588 = vmatpush.msra.mxu0 %v519
    %589 = vmatpush.msra.mxu0 %v518
    %590 = vmatpush.msra.mxu0 %v517
    %591 = vmatpush.msra.mxu0 %v516
    %592 = vmatpush.msra.mxu0 %v515
    %593 = vmatmul.f32.gmra.mxu0 %v575
    %v594 = vpop.f32.mrf.mxu0
    %v595 = vadd.f32 0.0, %v594
    %596 = vdwg.mxu0
    %v598 = vrot.slane %v595, 7
    %v600 = vsel %vm549, %v572, %v598
    %v601 = vmul.f32 %v600, 2.0
    %v602 = vsub.f32 %v601, %v156
    %v603 = vld [vmem:[#allocation8] sm:$0x1]
    %v604 = vld [vmem:[%s9] sm:$0xff]
    %v605 = vld [vmem:[%s9 + $0x8] sm:$0xff]
    %v606 = vld [vmem:[%s9 + $0x10] sm:$0xff]
    %v607 = vld [vmem:[%s9 + $0x18] sm:$0xff]
    %v608 = vld [vmem:[%s9 + $0x20] sm:$0xff]
    %v609 = vld [vmem:[%s9 + $0x28] sm:$0xff]
    %v610 = vld [vmem:[%s9 + $0x30] sm:$0xff]
    %v611 = vld [vmem:[%s9 + $0x38] sm:$0xff]
    %612 = vmatpush.msra.mxu0 0.0
    %613 = vmatpush.msra.mxu0 0.0
    %614 = vmatpush.msra.mxu0 0.0
    %615 = vmatpush.msra.mxu0 0.0
    %616 = vmatpush.msra.mxu0 0.0
    %617 = vmatpush.msra.mxu0 0.0
    %618 = vmatpush.msra.mxu0 0.0
    %619 = vmatpush.msra.mxu0 0.0
    %620 = vmatpush.msra.mxu0 %v611
    %621 = vmatpush.msra.mxu0 %v610
    %622 = vmatpush.msra.mxu0 %v609
    %623 = vmatpush.msra.mxu0 %v608
    %624 = vmatpush.msra.mxu0 %v607
    %625 = vmatpush.msra.mxu0 %v606
    %626 = vmatpush.msra.mxu0 %v605
    %627 = vmatpush.msra.mxu0 %v604
    %628 = vmatmul.f32.gmra.mxu0 %v167
    %v629 = vpop.f32.mrf.mxu0
    %v630 = vadd.f32 0.0, %v629
    %631 = vdwg.mxu0
    %v633 = vperm.slane %v603, 0
    %v635 = vadd.f32 %v633, %v630
    %s636 = scalar_lea.vmem %s9, 64
    %v637 = vld [vmem:[%s636] sm:$0xff]
    %v638 = vld [vmem:[%s636 + $0x8] sm:$0xff]
    %v639 = vld [vmem:[%s636 + $0x10] sm:$0xff]
    %v640 = vld [vmem:[%s636 + $0x18] sm:$0xff]
    %v641 = vld [vmem:[%s636 + $0x20] sm:$0xff]
    %v642 = vld [vmem:[%s636 + $0x28] sm:$0xff]
    %v643 = vld [vmem:[%s636 + $0x30] sm:$0xff]
    %v644 = vld [vmem:[%s636 + $0x38] sm:$0xff]
    %645 = vmatpush.msra.mxu0 0.0
    %646 = vmatpush.msra.mxu0 0.0
    %647 = vmatpush.msra.mxu0 0.0
    %648 = vmatpush.msra.mxu0 0.0
    %649 = vmatpush.msra.mxu0 0.0
    %650 = vmatpush.msra.mxu0 0.0
    %651 = vmatpush.msra.mxu0 0.0
    %652 = vmatpush.msra.mxu0 0.0
    %653 = vmatpush.msra.mxu0 %v644
    %654 = vmatpush.msra.mxu0 %v643
    %655 = vmatpush.msra.mxu0 %v642
    %656 = vmatpush.msra.mxu0 %v641
    %657 = vmatpush.msra.mxu0 %v640
    %658 = vmatpush.msra.mxu0 %v639
    %659 = vmatpush.msra.mxu0 %v638
    %660 = vmatpush.msra.mxu0 %v637
    %661 = vmatmul.f32.gmra.mxu0 %v552
    %v662 = vpop.f32.mrf.mxu0
    %v663 = vadd.f32 0.0, %v662
    %664 = vdwg.mxu0
    %v665 = vadd.f32 %v635, %v663
    %s666 = scalar_lea.vmem %s9, 128
    %v667 = vld [vmem:[%s666] sm:$0xff]
    %v668 = vld [vmem:[%s666 + $0x8] sm:$0xff]
    %v669 = vld [vmem:[%s666 + $0x10] sm:$0xff]
    %v670 = vld [vmem:[%s666 + $0x18] sm:$0xff]
    %v671 = vld [vmem:[%s666 + $0x20] sm:$0xff]
    %v672 = vld [vmem:[%s666 + $0x28] sm:$0xff]
    %v673 = vld [vmem:[%s666 + $0x30] sm:$0xff]
    %v674 = vld [vmem:[%s666 + $0x38] sm:$0xff]
    %v676 = vsel %vm165, %v602, 0
    %678 = vmatpush.msra.mxu0 0.0
    %679 = vmatpush.msra.mxu0 0.0
    %680 = vmatpush.msra.mxu0 0.0
    %681 = vmatpush.msra.mxu0 0.0
    %682 = vmatpush.msra.mxu0 0.0
    %683 = vmatpush.msra.mxu0 0.0
    %684 = vmatpush.msra.mxu0 0.0
    %685 = vmatpush.msra.mxu0 0.0
    %686 = vmatpush.msra.mxu0 %v674
    %687 = vmatpush.msra.mxu0 %v673
    %688 = vmatpush.msra.mxu0 %v672
    %689 = vmatpush.msra.mxu0 %v671
    %690 = vmatpush.msra.mxu0 %v670
    %691 = vmatpush.msra.mxu0 %v669
    %692 = vmatpush.msra.mxu0 %v668
    %693 = vmatpush.msra.mxu0 %v667
    %694 = vmatmul.f32.gmra.mxu0 %v676
    %v695 = vpop.f32.mrf.mxu0
    %v696 = vadd.f32 0.0, %v695
    %697 = vdwg.mxu0
    %v698 = vadd.f32 %v665, %v696
    %v699 = vtanh.pop %v698
    %v700 = vld [vmem:[%s4] sm:$0xff]
    %v701 = vld [vmem:[%s4 + $0x8] sm:$0xff]
    %v702 = vld [vmem:[%s4 + $0x10] sm:$0xff]
    %v703 = vld [vmem:[%s4 + $0x18] sm:$0xff]
    %v704 = vld [vmem:[%s4 + $0x20] sm:$0xff]
    %v705 = vld [vmem:[%s4 + $0x28] sm:$0xff]
    %v706 = vld [vmem:[%s4 + $0x30] sm:$0xff]
    %v707 = vld [vmem:[%s4 + $0x38] sm:$0xff]
    %v708 = vld [vmem:[%s4 + $0x40] sm:$0xff]
    %v709 = vld [vmem:[%s4 + $0x48] sm:$0xff]
    %v710 = vld [vmem:[%s4 + $0x50] sm:$0xff]
    %v711 = vld [vmem:[%s4 + $0x58] sm:$0xff]
    %v712 = vld [vmem:[%s4 + $0x60] sm:$0xff]
    %v713 = vld [vmem:[%s4 + $0x68] sm:$0xff]
    %v714 = vld [vmem:[%s4 + $0x70] sm:$0xff]
    %v715 = vld [vmem:[%s4 + $0x78] sm:$0xff]
    %716 = vmatpush.msra.mxu0 %v715
    %717 = vmatpush.msra.mxu0 %v714
    %718 = vmatpush.msra.mxu0 %v713
    %719 = vmatpush.msra.mxu0 %v712
    %720 = vmatpush.msra.mxu0 %v711
    %721 = vmatpush.msra.mxu0 %v710
    %722 = vmatpush.msra.mxu0 %v709
    %723 = vmatpush.msra.mxu0 %v708
    %724 = vmatpush.msra.mxu0 %v707
    %725 = vmatpush.msra.mxu0 %v706
    %726 = vmatpush.msra.mxu0 %v705
    %727 = vmatpush.msra.mxu0 %v704
    %728 = vmatpush.msra.mxu0 %v703
    %729 = vmatpush.msra.mxu0 %v702
    %730 = vmatpush.msra.mxu0 %v701
    %731 = vmatpush.msra.mxu0 %v700
    %732 = vmatmul.f32.gmra.mxu0 %v699
    %v733 = vpop.f32.mrf.mxu0
    %v734 = vadd.f32 0.0, %v733
    %735 = vdwg.mxu0
    %s736 = scalar_lea.vmem %s4, 128
    %v737 = vld [vmem:[%s736] sm:$0xff]
    %v738 = vld [vmem:[%s736 + $0x8] sm:$0xff]
    %v739 = vld [vmem:[%s736 + $0x10] sm:$0xff]
    %v740 = vld [vmem:[%s736 + $0x18] sm:$0xff]
    %v741 = vld [vmem:[%s736 + $0x20] sm:$0xff]
    %v742 = vld [vmem:[%s736 + $0x28] sm:$0xff]
    %v743 = vld [vmem:[%s736 + $0x30] sm:$0xff]
    %v744 = vld [vmem:[%s736 + $0x38] sm:$0xff]
    %v745 = vld [vmem:[%s736 + $0x40] sm:$0xff]
    %v746 = vld [vmem:[%s736 + $0x48] sm:$0xff]
    %v747 = vld [vmem:[%s736 + $0x50] sm:$0xff]
    %v748 = vld [vmem:[%s736 + $0x58] sm:$0xff]
    %v749 = vld [vmem:[%s736 + $0x60] sm:$0xff]
    %v750 = vld [vmem:[%s736 + $0x68] sm:$0xff]
    %v751 = vld [vmem:[%s736 + $0x70] sm:$0xff]
    %v752 = vld [vmem:[%s736 + $0x78] sm:$0xff]
    %v754 = vrot.slane %v699, 1
    %756 = vmatpush.msra.mxu0 %v752
    %757 = vmatpush.msra.mxu0 %v751
    %758 = vmatpush.msra.mxu0 %v750
    %759 = vmatpush.msra.mxu0 %v749
    %760 = vmatpush.msra.mxu0 %v748
    %761 = vmatpush.msra.mxu0 %v747
    %762 = vmatpush.msra.mxu0 %v746
    %763 = vmatpush.msra.mxu0 %v745
    %764 = vmatpush.msra.mxu0 %v744
    %765 = vmatpush.msra.mxu0 %v743
    %766 = vmatpush.msra.mxu0 %v742
    %767 = vmatpush.msra.mxu0 %v741
    %768 = vmatpush.msra.mxu0 %v740
    %769 = vmatpush.msra.mxu0 %v739
    %770 = vmatpush.msra.mxu0 %v738
    %771 = vmatpush.msra.mxu0 %v737
    %772 = vmatmul.f32.gmra.mxu0 %v754
    %v773 = vpop.f32.mrf.mxu0
    %v774 = vadd.f32 0.0, %v773
    %775 = vdwg.mxu0
    %v777 = vrot.slane %v774, 7
    %v779 = vsel %vm549, %v734, %v777
    %780 = vmatpush.msra.mxu0 %v715
    %781 = vmatpush.msra.mxu0 %v714
    %782 = vmatpush.msra.mxu0 %v713
    %783 = vmatpush.msra.mxu0 %v712
    %784 = vmatpush.msra.mxu0 %v711
    %785 = vmatpush.msra.mxu0 %v710
    %786 = vmatpush.msra.mxu0 %v709
    %787 = vmatpush.msra.mxu0 %v708
    %788 = vmatpush.msra.mxu0 %v707
    %789 = vmatpush.msra.mxu0 %v706
    %790 = vmatpush.msra.mxu0 %v705
    %791 = vmatpush.msra.mxu0 %v704
    %792 = vmatpush.msra.mxu0 %v703
    %793 = vmatpush.msra.mxu0 %v702
    %794 = vmatpush.msra.mxu0 %v701
    %795 = vmatpush.msra.mxu0 %v700
    %796 = vmatmul.f32.gmra.mxu0 %v779
    %v797 = vpop.f32.mrf.mxu0
    %v798 = vadd.f32 0.0, %v797
    %799 = vdwg.mxu0
    %v801 = vrot.slane %v779, 1
    %803 = vmatpush.msra.mxu0 %v752
    %804 = vmatpush.msra.mxu0 %v751
    %805 = vmatpush.msra.mxu0 %v750
    %806 = vmatpush.msra.mxu0 %v749
    %807 = vmatpush.msra.mxu0 %v748
    %808 = vmatpush.msra.mxu0 %v747
    %809 = vmatpush.msra.mxu0 %v746
    %810 = vmatpush.msra.mxu0 %v745
    %811 = vmatpush.msra.mxu0 %v744
    %812 = vmatpush.msra.mxu0 %v743
    %813 = vmatpush.msra.mxu0 %v742
    %814 = vmatpush.msra.mxu0 %v741
    %815 = vmatpush.msra.mxu0 %v740
    %816 = vmatpush.msra.mxu0 %v739
    %817 = vmatpush.msra.mxu0 %v738
    %818 = vmatpush.msra.mxu0 %v737
    %819 = vmatmul.f32.gmra.mxu0 %v801
    %v820 = vpop.f32.mrf.mxu0
    %v821 = vadd.f32 0.0, %v820
    %822 = vdwg.mxu0
    %v824 = vrot.slane %v821, 7
    %v826 = vsel %vm549, %v798, %v824
    %v827 = vmul.f32 %v826, 2.0
    %v828 = vsub.f32 %v827, %v699
    %v829 = vld [vmem:[#allocation10] sm:$0x1]
    %v830 = vld [vmem:[%s11] sm:$0xff]
    %v831 = vld [vmem:[%s11 + $0x8] sm:$0xff]
    %v832 = vld [vmem:[%s11 + $0x10] sm:$0xff]
    %v833 = vld [vmem:[%s11 + $0x18] sm:$0xff]
    %v834 = vld [vmem:[%s11 + $0x20] sm:$0xff]
    %v835 = vld [vmem:[%s11 + $0x28] sm:$0xff]
    %v836 = vld [vmem:[%s11 + $0x30] sm:$0xff]
    %v837 = vld [vmem:[%s11 + $0x38] sm:$0xff]
    %v838 = vld [vmem:[%s11 + $0x40] sm:$0xff]
    %v839 = vld [vmem:[%s11 + $0x48] sm:$0xff]
    %v840 = vld [vmem:[%s11 + $0x50] sm:$0xff]
    %v841 = vld [vmem:[%s11 + $0x58] sm:$0xff]
    %v842 = vld [vmem:[%s11 + $0x60] sm:$0xff]
    %v843 = vld [vmem:[%s11 + $0x68] sm:$0xff]
    %v844 = vld [vmem:[%s11 + $0x70] sm:$0xff]
    %v845 = vld [vmem:[%s11 + $0x78] sm:$0xff]
    %846 = vmatpush.msra.mxu0 %v845
    %847 = vmatpush.msra.mxu0 %v844
    %848 = vmatpush.msra.mxu0 %v843
    %849 = vmatpush.msra.mxu0 %v842
    %850 = vmatpush.msra.mxu0 %v841
    %851 = vmatpush.msra.mxu0 %v840
    %852 = vmatpush.msra.mxu0 %v839
    %853 = vmatpush.msra.mxu0 %v838
    %854 = vmatpush.msra.mxu0 %v837
    %855 = vmatpush.msra.mxu0 %v836
    %856 = vmatpush.msra.mxu0 %v835
    %857 = vmatpush.msra.mxu0 %v834
    %858 = vmatpush.msra.mxu0 %v833
    %859 = vmatpush.msra.mxu0 %v832
    %860 = vmatpush.msra.mxu0 %v831
    %861 = vmatpush.msra.mxu0 %v830
    %862 = vmatmul.f32.gmra.mxu0 %v699
    %v863 = vpop.f32.mrf.mxu0
    %v864 = vadd.f32 0.0, %v863
    %865 = vdwg.mxu0
    %v867 = vperm.slane %v829, 0
    %v869 = vadd.f32 %v867, %v864
    %s870 = scalar_lea.vmem %s11, 128
    %v871 = vld [vmem:[%s870] sm:$0xff]
    %v872 = vld [vmem:[%s870 + $0x8] sm:$0xff]
    %v873 = vld [vmem:[%s870 + $0x10] sm:$0xff]
    %v874 = vld [vmem:[%s870 + $0x18] sm:$0xff]
    %v875 = vld [vmem:[%s870 + $0x20] sm:$0xff]
    %v876 = vld [vmem:[%s870 + $0x28] sm:$0xff]
    %v877 = vld [vmem:[%s870 + $0x30] sm:$0xff]
    %v878 = vld [vmem:[%s870 + $0x38] sm:$0xff]
    %v879 = vld [vmem:[%s870 + $0x40] sm:$0xff]
    %v880 = vld [vmem:[%s870 + $0x48] sm:$0xff]
    %v881 = vld [vmem:[%s870 + $0x50] sm:$0xff]
    %v882 = vld [vmem:[%s870 + $0x58] sm:$0xff]
    %v883 = vld [vmem:[%s870 + $0x60] sm:$0xff]
    %v884 = vld [vmem:[%s870 + $0x68] sm:$0xff]
    %v885 = vld [vmem:[%s870 + $0x70] sm:$0xff]
    %v886 = vld [vmem:[%s870 + $0x78] sm:$0xff]
    %887 = vmatpush.msra.mxu0 %v886
    %888 = vmatpush.msra.mxu0 %v885
    %889 = vmatpush.msra.mxu0 %v884
    %890 = vmatpush.msra.mxu0 %v883
    %891 = vmatpush.msra.mxu0 %v882
    %892 = vmatpush.msra.mxu0 %v881
    %893 = vmatpush.msra.mxu0 %v880
    %894 = vmatpush.msra.mxu0 %v879
    %895 = vmatpush.msra.mxu0 %v878
    %896 = vmatpush.msra.mxu0 %v877
    %897 = vmatpush.msra.mxu0 %v876
    %898 = vmatpush.msra.mxu0 %v875
    %899 = vmatpush.msra.mxu0 %v874
    %900 = vmatpush.msra.mxu0 %v873
    %901 = vmatpush.msra.mxu0 %v872
    %902 = vmatpush.msra.mxu0 %v871
    %903 = vmatmul.f32.gmra.mxu0 %v779
    %v904 = vpop.f32.mrf.mxu0
    %v905 = vadd.f32 0.0, %v904
    %906 = vdwg.mxu0
    %v907 = vadd.f32 %v869, %v905
    %s908 = scalar_lea.vmem %s11, 256
    %v909 = vld [vmem:[%s908] sm:$0xff]
    %v910 = vld [vmem:[%s908 + $0x8] sm:$0xff]
    %v911 = vld [vmem:[%s908 + $0x10] sm:$0xff]
    %v912 = vld [vmem:[%s908 + $0x18] sm:$0xff]
    %v913 = vld [vmem:[%s908 + $0x20] sm:$0xff]
    %v914 = vld [vmem:[%s908 + $0x28] sm:$0xff]
    %v915 = vld [vmem:[%s908 + $0x30] sm:$0xff]
    %v916 = vld [vmem:[%s908 + $0x38] sm:$0xff]
    %v917 = vld [vmem:[%s908 + $0x40] sm:$0xff]
    %v918 = vld [vmem:[%s908 + $0x48] sm:$0xff]
    %v919 = vld [vmem:[%s908 + $0x50] sm:$0xff]
    %v920 = vld [vmem:[%s908 + $0x58] sm:$0xff]
    %v921 = vld [vmem:[%s908 + $0x60] sm:$0xff]
    %v922 = vld [vmem:[%s908 + $0x68] sm:$0xff]
    %v923 = vld [vmem:[%s908 + $0x70] sm:$0xff]
    %v924 = vld [vmem:[%s908 + $0x78] sm:$0xff]
    %925 = vmatpush.msra.mxu0 %v924
    %926 = vmatpush.msra.mxu0 %v923
    %927 = vmatpush.msra.mxu0 %v922
    %928 = vmatpush.msra.mxu0 %v921
    %929 = vmatpush.msra.mxu0 %v920
    %930 = vmatpush.msra.mxu0 %v919
    %931 = vmatpush.msra.mxu0 %v918
    %932 = vmatpush.msra.mxu0 %v917
    %933 = vmatpush.msra.mxu0 %v916
    %934 = vmatpush.msra.mxu0 %v915
    %935 = vmatpush.msra.mxu0 %v914
    %936 = vmatpush.msra.mxu0 %v913
    %937 = vmatpush.msra.mxu0 %v912
    %938 = vmatpush.msra.mxu0 %v911
    %939 = vmatpush.msra.mxu0 %v910
    %940 = vmatpush.msra.mxu0 %v909
    %941 = vmatmul.f32.gmra.mxu0 %v828
    %v942 = vpop.f32.mrf.mxu0
    %v943 = vadd.f32 0.0, %v942
    %944 = vdwg.mxu0
    %v945 = vadd.f32 %v907, %v943
    %v946 = vld [vmem:[#allocation11] sm:$0xff]
    %v947 = vld [vmem:[#allocation11 + $0x8] sm:$0xff]
    %v948 = vld [vmem:[#allocation11 + $0x10] sm:$0xff]
    %v949 = vld [vmem:[#allocation11 + $0x18] sm:$0xff]
    %v950 = vld [vmem:[#allocation11 + $0x20] sm:$0xff]
    %v951 = vld [vmem:[#allocation11 + $0x28] sm:$0xff]
    %v952 = vld [vmem:[#allocation11 + $0x30] sm:$0xff]
    %v953 = vld [vmem:[#allocation11 + $0x38] sm:$0xff]
    %v954 = vld [vmem:[#allocation13] sm:$0xff]
    %v955 = vld [vmem:[#allocation13 + $0x8] sm:$0xff]
    %v956 = vld [vmem:[#allocation13 + $0x10] sm:$0xff]
    %v957 = vld [vmem:[#allocation13 + $0x18] sm:$0xff]
    %v958 = vld [vmem:[#allocation13 + $0x20] sm:$0xff]
    %v959 = vld [vmem:[#allocation13 + $0x28] sm:$0xff]
    %v960 = vld [vmem:[#allocation13 + $0x30] sm:$0xff]
    %v961 = vld [vmem:[#allocation13 + $0x38] sm:$0xff]
    %v963 = vsel %vm165, %v945, 0
    %965 = vmatpush.msra.mxu0 0.0
    %966 = vmatpush.msra.mxu0 0.0
    %967 = vmatpush.msra.mxu0 0.0
    %968 = vmatpush.msra.mxu0 0.0
    %969 = vmatpush.msra.mxu0 0.0
    %970 = vmatpush.msra.mxu0 0.0
    %971 = vmatpush.msra.mxu0 0.0
    %972 = vmatpush.msra.mxu0 0.0
    %973 = vmatpush.msra.mxu0 %v961
    %974 = vmatpush.msra.mxu0 %v960
    %975 = vmatpush.msra.mxu0 %v959
    %976 = vmatpush.msra.mxu0 %v958
    %977 = vmatpush.msra.mxu0 %v957
    %978 = vmatpush.msra.mxu0 %v956
    %979 = vmatpush.msra.mxu0 %v955
    %980 = vmatpush.msra.mxu0 %v954
    %981 = vmatmul.f32.gmra.mxu0 %v963
    %v982 = vpop.f32.mrf.mxu0
    %v983 = vadd.f32 0.0, %v982
    %984 = vdwg.mxu0
    %v986 = vsel %vm165, %v485, 0
    %988 = vmatpush.msra.mxu0 0.0
    %989 = vmatpush.msra.mxu0 0.0
    %990 = vmatpush.msra.mxu0 0.0
    %991 = vmatpush.msra.mxu0 0.0
    %992 = vmatpush.msra.mxu0 0.0
    %993 = vmatpush.msra.mxu0 0.0
    %994 = vmatpush.msra.mxu0 0.0
    %995 = vmatpush.msra.mxu0 0.0
    %996 = vmatpush.msra.mxu0 %v953
    %997 = vmatpush.msra.mxu0 %v952
    %998 = vmatpush.msra.mxu0 %v951
    %999 = vmatpush.msra.mxu0 %v950
    %1000 = vmatpush.msra.mxu0 %v949
    %1001 = vmatpush.msra.mxu0 %v948
    %1002 = vmatpush.msra.mxu0 %v947
    %1003 = vmatpush.msra.mxu0 %v946
    %1004 = vmatmul.f32.gmra.mxu0 %v986
    %v1005 = vpop.f32.mrf.mxu0
    %v1006 = vadd.f32 %v983, %v1005
    %1007 = vdwg.mxu0
    %v1008 = vld [vmem:[%s15] sm:$0x1]
    %v1010 = vperm.slane %v1008, 0
    %v1012 = vadd.f32 %v1006, %v1010
    %v1013 = vxor.u32 %v1012, 2147483648
    %v1014 = vmul.f32 %v1013, 1.442695
    %v1015 = vpow.pop %v1014
    %v1016 = vadd.f32 %v1015, 1.0
    %v1017 = vrcp.pop %v1016
    %v1018 = vmul.f32 %v1016, %v1017
    %v1019 = vsub.f32 1.0, %v1018
    %v1020 = vmul.f32 %v1017, %v1019
    %v1021 = vadd.f32 %v1017, %v1020
    %vm1022 = vweird.f32 %v1016
    %vm1023 = vweird.f32 %v1017
    %vm1024 = vmor %vm1022, %vm1023
    %v1025 = vsel %vm1024, %v1017, %v1021
    %v1026 = vand.u32 2147483647, %v1016
    %vm1027 = vcmp.eq.f32.partialorder %v1026, 8.507059e+37
    %v1028 = vand.u32 %v1016, 2147483648
    %v1029 = vor.u32 1.1754944e-38, %v1028
    %v1030 = vsel %vm1027, %v1029, %v1025
    %v1031 = vmul.f32 1.0, %v1030
    %v1032 = vsub.f32 %v485, %v945
    %v1033 = vmul.f32 %v1031, %v1032
    %v1034 = vadd.f32 %v945, %v1033
    %v1035 = vld [vmem:[%s16] sm:$0x1]
    %v1037 = vperm.slane %v1035, 0
    %v1039 = vmul.f32 %v1037, %v156
    %v1040 = vadd.f32 %v1034, %v1039
    %vm1041 = vcmask 517120
    %1042 = vst.msk [vmem:[#allocation14] sm:$0x3] %vm1041, %v1040
    // Predicated region
    $region98: #{ode_func_forward_many.1} parent=1 // pred_check
      _
    $region99: #{ode_func_forward_many.1} parent=1 // pred_check_branch
      %1044 = sbr.rel (0) target = $region101
    $region100: #{ode_func_forward_many.1} parent=1 // pred_region
      %1046 = vsyncadd [#allocation4], 0
      %s1048 = sshll.u32 [#allocation14], 4
      %s1049 = int_to_ptr.vmem [resolvable:$true] %s1048
      %s1050 = sshll.u32 %s17, 4
      %s1051 = int_to_ptr.hbm [resolvable:$true] %s1050
      %1053 = dma.vmem_to_hbm [thread:$0]  %s1049, 32, %s1051, [#allocation4]
    $region101: #{ode_func_forward_many.1} parent=1 // pred_fallthru
      _
    // Predicated region
    $region102: #{ode_func_forward_many.1} parent=1 // pred_check
      _
    $region103: #{ode_func_forward_many.1} parent=1 // pred_check_branch
      %1055 = sbr.rel (0) target = $region105
    $region104: #{ode_func_forward_many.1} parent=1 // pred_region
      %1057 = dma.done [#allocation4], 32
    $region105: #{ode_func_forward_many.1} parent=1 // pred_fallthru
      _
    %1058 = vsyncpa [#allocation3], 1
    %1059 = vsyncpa [#allocation6], 1
    %1060 = vsyncpa [#allocation9], 1
    %1061 = vsyncpa [#allocation12], 1
    %1062 = vsyncpa [#allocation4], 1

</llo_original>
